<compile_context>
chip_gen: v7x
topology: tpu7x:2x2x1
jax: 0.10.0
libtpu: 0.0.40
codegen_flags: <defaults>
</compile_context>

<pallas_src>
import functools
import math
from typing import NamedTuple

import jax
import jax.numpy as jnp
from jax.experimental import pallas as pl
from jax.experimental.pallas import tpu as pltpu


def _round_up(x, m):
    return ((x + m - 1) // m) * m


def _vmem_capacity_bytes():
    """Best-effort physical VMEM per TensorCore (v5e/v6e: 128 MiB, v7x: 64 MiB)."""
    try:
        cap = getattr(pltpu.get_tpu_info(), "vmem_capacity_bytes", None)
        if cap:
            return int(cap)
    except Exception:
        pass
    try:
        kind = jax.devices()[0].device_kind.lower()
    except Exception:
        kind = ""
    if "v7" in kind:
        return 64 * 1024 * 1024
    return 128 * 1024 * 1024


def _maybe_pad2(a, rows, cols):
    pr, pc = rows - a.shape[0], cols - a.shape[1]
    if pr == 0 and pc == 0:
        return a                     # no wrapper-side copy when already aligned
    return jnp.pad(a, ((0, pr), (0, pc)))


class GRUWeights(NamedTuple):
    """Fused, pre-transposed, lane-padded GRU weights (prepare once, reuse)."""
    wx_all: jax.Array    # (Ip, 3*Hp)  [update | reset | candidate] x-weights
    wh_zr: jax.Array     # (Hp, 2*Hp)  [update | reset] h-weights
    wh_n: jax.Array      # (Hp, Hp)    candidate h-weights
    input_size: int
    hidden_size: int


def prepare_gru_weights(w_update, w_reset, w_input, input_size, *,
                        compute_dtype=jnp.bfloat16):
    """Split nn.Linear weights (H, I+H) into x/h parts, transpose, pad to 128
    lanes and fuse. Call once and reuse across timesteps."""
    w_update = jnp.asarray(w_update)
    H = w_update.shape[0]
    I = int(input_size)
    Ip, Hp = _round_up(I, 128), _round_up(H, 128)
    dt = jnp.dtype(compute_dtype)

    def split_pad(w):
        w = jnp.asarray(w).astype(dt)
        wx = _maybe_pad2(w[:, :I].T, Ip, Hp)      # (Ip, Hp)
        wh = _maybe_pad2(w[:, I:].T, Hp, Hp)      # (Hp, Hp)
        return wx, wh

    wzx, wzh = split_pad(w_update)
    wrx, wrh = split_pad(w_reset)
    wnx, wnh = split_pad(w_input)

    return GRUWeights(
        wx_all=jnp.concatenate([wzx, wrx, wnx], axis=1),   # (Ip, 3Hp)
        wh_zr=jnp.concatenate([wzh, wrh], axis=1),         # (Hp, 2Hp)
        wh_n=wnh,                                          # (Hp, Hp)
        input_size=I,
        hidden_size=H,
    )


def gru_cell_kernel(x_ref, h_ref, wx_ref, whzr_ref, whn_ref, out_ref, *, n_splits):
    """One (tm, Hp) row tile of the concat-GRU update.

    x_ref    : (tm, Ip)     compute dtype (bf16 by default)
    h_ref    : (tm, Hp)     compute dtype
    wx_ref   : (Ip, 3*Hp)   [update | reset | candidate] x-weights
    whzr_ref : (Hp, 2*Hp)   [update | reset] h-weights
    whn_ref  : (Hp, Hp)     candidate h-weights
    out_ref  : (tm, Hp)     output dtype (input dtype of the caller)
    """
    hp = out_ref.shape[-1]
    tm = out_ref.shape[0]
    rows = tm // n_splits

    # Grid-resident weights; load once per tile.
    wx = wx_ref[...]
    wh_zr = whzr_ref[...]
    wh_n = whn_ref[...]

    # Statically unrolled split: each half has an independent MXU chain, so the
    # scheduler can overlap half B's gate matmuls with half A's sigmoid / r*h
    # (VPU+EUP) and candidate matmul, hiding the serial MXU->VPU->MXU bubble.
    for s in range(n_splits):
        sl = pl.ds(s * rows, rows)
        x = x_ref[sl, :]
        h = h_ref[sl, :]

        # Fused gate matmuls: storage-dtype operands, f32 MXU accumulation.
        gx = jnp.dot(x, wx, preferred_element_type=jnp.float32)      # (rows, 3Hp)
        gh = jnp.dot(h, wh_zr, preferred_element_type=jnp.float32)   # (rows, 2Hp)

        z = jax.nn.sigmoid(gx[:, :hp] + gh[:, :hp])
        r = jax.nn.sigmoid(gx[:, hp:2 * hp] + gh[:, hp:2 * hp])

        h_f32 = h.astype(jnp.float32)
        rh = (r * h_f32).astype(h.dtype)
        n = jnp.tanh(gx[:, 2 * hp:] +
                     jnp.dot(rh, wh_n, preferred_element_type=jnp.float32))

        # h' = (1-z)*h + z*n  ==  h + z*(n - h)   (one fewer temp / multiply)
        out_ref[sl, :] = (h_f32 + z * (n - h_f32)).astype(out_ref.dtype)


def gru_cell_apply(x, h, weights: GRUWeights, *, tm=512):
    """x: (B, S, I), h: (B, S, H), weights from prepare_gru_weights()."""
    B, S, I = x.shape
    H = h.shape[-1]
    assert I == weights.input_size and H == weights.hidden_size
    M = B * S
    cdt = weights.wx_all.dtype
    out_dtype = x.dtype

    Ip = weights.wx_all.shape[0]
    Hp = weights.wh_n.shape[0]
    isz = jnp.dtype(cdt).itemsize
    osz = jnp.dtype(out_dtype).itemsize

    # ---- generation-aware VMEM budget & row-tile sizing ---------------------
    budget = int(0.8 * _vmem_capacity_bytes())
    weights_bytes = (Ip * 3 * Hp + Hp * 2 * Hp + Hp * Hp) * isz
    if 2 * weights_bytes + (8 << 20) > budget:
        # TODO(synk): add a K/N-tiled fallback (arbitrary reduction axis + f32
        # VMEM accumulator) for hidden sizes whose fused resident weights do
        # not fit in half the VMEM budget.
        raise NotImplementedError(
            f"GRU size too large for the resident-weight kernel "
            f"({weights_bytes} B fused weights vs {budget} B VMEM budget)")
    # Per tile row: 2x-buffered x/h/out streams + f32 gate intermediates.
    per_row = (2 * Ip + 2 * Hp) * isz + 2 * Hp * osz + 12 * Hp * 4
    avail = budget - 2 * weights_bytes - (4 << 20)
    tm_vmem_max = max(8, (avail // per_row) // 8 * 8)

    Mr = _round_up(M, 8)
    tm_eff = max(8, (int(tm) // 8) * 8)          # block dim must be a multiple of 8
    tm_eff = min(tm_eff, Mr, tm_vmem_max)
    # Guarantee >=2 grid steps so the "parallel" axis can shard across v7x's
    # two TensorCores (also caps dead-row padding for small M).
    if Mr >= 16 and pl.cdiv(Mr, tm_eff) < 2:
        tm_eff = _round_up(pl.cdiv(Mr, 2), 8)
    Mp = _round_up(Mr, tm_eff)
    grid = (Mp // tm_eff,)
    n_splits = 2 if (tm_eff >= 16 and tm_eff % 16 == 0) else 1

    # ---- operand staging (copy-free when already lane/row aligned) ----------
    x2 = _maybe_pad2(x.reshape(M, I).astype(cdt), Mp, Ip)
    h2 = _maybe_pad2(h.reshape(M, H).astype(cdt), Mp, Hp)

    x_spec = pl.BlockSpec((tm_eff, Ip), lambda i: (i, 0))
    h_spec = pl.BlockSpec((tm_eff, Hp), lambda i: (i, 0))
    out_spec = pl.BlockSpec((tm_eff, Hp), lambda i: (i, 0))

    def weight_spec(shape, single_buffer):
        # Constant index_map -> weights are grid-resident; a single VMEM copy
        # suffices (double-buffering them only wastes VMEM, critical on v7x).
        if single_buffer:
            return pl.BlockSpec(shape, lambda i: (0, 0),
                                pipeline_mode=pl.Buffered(1))
        return pl.BlockSpec(shape, lambda i: (0, 0))

    cost = pl.CostEstimate(
        flops=2 * Mp * (Ip * 3 * Hp + Hp * 3 * Hp),
        transcendentals=3 * Mp * Hp,
        bytes_accessed=(Mp * (Ip + Hp) * isz        # x, h reads (padded)
                        + Mp * Hp * osz             # h' write
                        + (Ip * 3 * Hp + Hp * 3 * Hp) * isz),  # fused weights
    )

    kernel = functools.partial(gru_cell_kernel, n_splits=n_splits)

    def run(single_buffer_weights):
        return pl.pallas_call(
            kernel,
            out_shape=jax.ShapeDtypeStruct((Mp, Hp), out_dtype),
            grid_spec=pltpu.PrefetchScalarGridSpec(
                num_scalar_prefetch=0,
                grid=grid,
                in_specs=[x_spec, h_spec,
                          weight_spec((Ip, 3 * Hp), single_buffer_weights),
                          weight_spec((Hp, 2 * Hp), single_buffer_weights),
                          weight_spec((Hp, Hp), single_buffer_weights)],
                out_specs=out_spec,
            ),
            compiler_params=pltpu.CompilerParams(
                dimension_semantics=("parallel",),
                vmem_limit_bytes=budget,
            ),
            cost_estimate=cost,
        )(x2, h2, weights.wx_all, weights.wh_zr, weights.wh_n)

    try:
        out = run(True)
    except Exception:
        # pl.Buffered(1) not supported by this jax/libtpu -> fall back to the
        # default double-buffered weight pipeline (correctness identical).
        out = run(False)

    return out[:M, :H].reshape(B, S, H)


def gru_cell_forward(x, h, w_update, w_reset, w_input, *, tm=512,
                     compute_dtype=None):
    """Convenience one-shot wrapper.  For recurrent use, call
    prepare_gru_weights() once and gru_cell_apply() per timestep."""
    if compute_dtype is None:
        # f32 matmuls are emulated on the MXU; default to bf16 operands with
        # f32 accumulation.  Pass compute_dtype=jnp.float32 for full precision.
        compute_dtype = jnp.bfloat16 if x.dtype == jnp.float32 else x.dtype
    weights = prepare_gru_weights(w_update, w_reset, w_input, x.shape[-1],
                                  compute_dtype=compute_dtype)
    return gru_cell_apply(x, h, weights, tm=tm)


def xavier_uniform(key, shape, dtype=jnp.float32):
    fan_out, fan_in = shape  # nn.Linear weight is (out_features, in_features)
    bound = math.sqrt(6.0 / (fan_in + fan_out))
    return jax.random.uniform(key, shape, dtype=dtype, minval=-bound, maxval=bound)


def _reference(x, h, w_update, w_reset, w_input):
    combined = jnp.concatenate([x, h], axis=2)
    z = jax.nn.sigmoid(combined @ w_update.T)
    r = jax.nn.sigmoid(combined @ w_reset.T)
    n = jnp.tanh(jnp.concatenate([x, r * h], axis=2) @ w_input.T)
    return (1.0 - z) * h + z * n


if __name__ == "__main__":
    B, S, I, H = 2, 8, 16, 32

    key = jax.random.PRNGKey(0)
    kx, kh, kz, kr, ki = jax.random.split(key, 5)

    x = jax.random.normal(kx, (B, S, I), dtype=jnp.float32)
    h = jax.random.normal(kh, (B, S, H), dtype=jnp.float32)

    # Deterministic xavier_uniform weights (bias=False), shapes (H, I + H).
    w_update = xavier_uniform(kz, (H, I + H))
    w_reset = xavier_uniform(kr, (H, I + H))
    w_input = xavier_uniform(ki, (H, I + H))

    ref = _reference(x, h, w_update, w_reset, w_input)

    # Default path: bf16 MXU operands, f32 accumulation; weights prepared once.
    w_prep = prepare_gru_weights(w_update, w_reset, w_input, I)
    out_bf16 = gru_cell_apply(x, h, w_prep)
    jax.block_until_ready(out_bf16)
    assert out_bf16.shape == ref.shape and out_bf16.dtype == ref.dtype
    assert jnp.allclose(out_bf16, ref, atol=1e-1, rtol=1e-1)

    # Full-f32 opt-in path: tight tolerance against the f32 reference.
    w_prep_f32 = prepare_gru_weights(w_update, w_reset, w_input, I,
                                     compute_dtype=jnp.float32)
    out_f32 = gru_cell_apply(x, h, w_prep_f32)
    jax.block_until_ready(out_f32)
    assert jnp.allclose(out_f32, ref, atol=2e-5, rtol=2e-5)

    # Exercise a multi-step grid and the 2-way intra-tile split path.
    B2, S2 = 4, 16
    x2 = jax.random.normal(kx, (B2, S2, I), dtype=jnp.float32)
    h2 = jax.random.normal(kh, (B2, S2, H), dtype=jnp.float32)
    out2 = gru_cell_forward(x2, h2, w_update, w_reset, w_input, tm=32,
                            compute_dtype=jnp.float32)
    jax.block_until_ready(out2)
    ref2 = _reference(x2, h2, w_update, w_reset, w_input)
    assert jnp.allclose(out2, ref2, atol=2e-5, rtol=2e-5)

    print("KERNEL_OK")
</pallas_src>

<mosaic_0001>
module attributes {stable_mosaic.version = 11 : i64} {
  func.func @gru_cell_kernel(%arg0: i32, %arg1: memref<8x128xbf16, #tpu.memory_space<vmem>>, %arg2: memref<8x128xbf16, #tpu.memory_space<vmem>>, %arg3: memref<128x384xbf16, #tpu.memory_space<vmem>>, %arg4: memref<128x256xbf16, #tpu.memory_space<vmem>>, %arg5: memref<128x128xbf16, #tpu.memory_space<vmem>>, %arg6: memref<8x128xf32, #tpu.memory_space<vmem>>) attributes {dimension_semantics = [#tpu.dimension_semantics<parallel>], iteration_bounds = array<i64: 2>, scalar_prefetch = 0 : i64, scratch_operands = 0 : i64, tpu.core_type = #tpu.core_type<tc>, window_params = [{transform_indices = @transform_0, window_bounds = array<i64: 8, 128>}, {transform_indices = @transform_1, window_bounds = array<i64: 8, 128>}, {pipeline_mode = #tpu.pipeline_mode<synchronous>, transform_indices = @transform_2, window_bounds = array<i64: 128, 384>}, {pipeline_mode = #tpu.pipeline_mode<synchronous>, transform_indices = @transform_3, window_bounds = array<i64: 128, 256>}, {pipeline_mode = #tpu.pipeline_mode<synchronous>, transform_indices = @transform_4, window_bounds = array<i64: 128, 128>}, {transform_indices = @transform_5, window_bounds = array<i64: 8, 128>}]} {
    %c0 = arith.constant 0 : index
    %c0_0 = arith.constant 0 : index
    %0 = vector.load %arg3[%c0, %c0_0] : memref<128x384xbf16, #tpu.memory_space<vmem>>, vector<128x384xbf16>
    %c0_1 = arith.constant 0 : index
    %c0_2 = arith.constant 0 : index
    %1 = vector.load %arg4[%c0_1, %c0_2] : memref<128x256xbf16, #tpu.memory_space<vmem>>, vector<128x256xbf16>
    %c0_3 = arith.constant 0 : index
    %c0_4 = arith.constant 0 : index
    %2 = vector.load %arg5[%c0_3, %c0_4] : memref<128x128xbf16, #tpu.memory_space<vmem>>, vector<128x128xbf16>
    %c0_5 = arith.constant 0 : index
    %c0_6 = arith.constant 0 : index
    %3 = vector.load %arg1[%c0_5, %c0_6] : memref<8x128xbf16, #tpu.memory_space<vmem>>, vector<8x128xbf16>
    %c0_7 = arith.constant 0 : index
    %c0_8 = arith.constant 0 : index
    %4 = vector.load %arg2[%c0_7, %c0_8] : memref<8x128xbf16, #tpu.memory_space<vmem>>, vector<8x128xbf16>
    %cst = arith.constant dense<0.000000e+00> : vector<8x384xf32>
    %5 = tpu.matmul %3, %0, %cst {dimension_numbers = #tpu.dot_dimension_numbers<[1], [0], [0], [1], [0, 0, 1, 1], [], []>} : vector<8x128xbf16>, vector<128x384xbf16>, vector<8x384xf32> -> vector<8x384xf32>
    %cst_9 = arith.constant dense<0.000000e+00> : vector<8x256xf32>
    %6 = tpu.matmul %4, %1, %cst_9 {dimension_numbers = #tpu.dot_dimension_numbers<[1], [0], [0], [1], [0, 0, 1, 1], [], []>} : vector<8x128xbf16>, vector<128x256xbf16>, vector<8x256xf32> -> vector<8x256xf32>
    %7 = vector.extract_strided_slice %5 {offsets = [0, 0], sizes = [8, 128], strides = [1, 1]} : vector<8x384xf32> to vector<8x128xf32>
    %8 = vector.extract_strided_slice %6 {offsets = [0, 0], sizes = [8, 128], strides = [1, 1]} : vector<8x256xf32> to vector<8x128xf32>
    %9 = arith.addf %7, %8 : vector<8x128xf32>
    %10 = arith.negf %9 : vector<8x128xf32>
    %11 = math.exp %10 : vector<8x128xf32>
    %cst_10 = arith.constant 1.000000e+00 : f32
    %12 = vector.broadcast %cst_10 : f32 to vector<8x128xf32>
    %13 = arith.addf %12, %11 : vector<8x128xf32>
    %14 = arith.divf %12, %13 : vector<8x128xf32>
    %15 = vector.extract_strided_slice %5 {offsets = [0, 128], sizes = [8, 128], strides = [1, 1]} : vector<8x384xf32> to vector<8x128xf32>
    %16 = vector.extract_strided_slice %6 {offsets = [0, 128], sizes = [8, 128], strides = [1, 1]} : vector<8x256xf32> to vector<8x128xf32>
    %17 = arith.addf %15, %16 : vector<8x128xf32>
    %18 = arith.negf %17 : vector<8x128xf32>
    %19 = math.exp %18 : vector<8x128xf32>
    %cst_11 = arith.constant 1.000000e+00 : f32
    %20 = vector.broadcast %cst_11 : f32 to vector<8x128xf32>
    %21 = arith.addf %20, %19 : vector<8x128xf32>
    %22 = arith.divf %20, %21 : vector<8x128xf32>
    %23 = arith.extf %4 : vector<8x128xbf16> to vector<8x128xf32>
    %24 = arith.mulf %22, %23 : vector<8x128xf32>
    %25 = arith.truncf %24 : vector<8x128xf32> to vector<8x128xbf16>
    %26 = vector.extract_strided_slice %5 {offsets = [0, 256], sizes = [8, 128], strides = [1, 1]} : vector<8x384xf32> to vector<8x128xf32>
    %cst_12 = arith.constant dense<0.000000e+00> : vector<8x128xf32>
    %27 = tpu.matmul %25, %2, %cst_12 {dimension_numbers = #tpu.dot_dimension_numbers<[1], [0], [0], [1], [0, 0, 1, 1], [], []>} : vector<8x128xbf16>, vector<128x128xbf16>, vector<8x128xf32> -> vector<8x128xf32>
    %28 = arith.addf %26, %27 : vector<8x128xf32>
    %29 = math.tanh %28 : vector<8x128xf32>
    %30 = arith.subf %29, %23 : vector<8x128xf32>
    %31 = arith.mulf %14, %30 : vector<8x128xf32>
    %32 = arith.addf %23, %31 : vector<8x128xf32>
    %c0_13 = arith.constant 0 : index
    %c0_14 = arith.constant 0 : index
    %33 = vector.load %arg6[%c0_13, %c0_14] : memref<8x128xf32, #tpu.memory_space<vmem>>, vector<8x128xf32>
    tpu.vector_store %arg6[%c0_13, %c0_14], %32 {strides = array<i32>} : memref<8x128xf32, #tpu.memory_space<vmem>>, vector<8x128xf32>,
    return
  }
  func.func @transform_0(%arg0: i32) -> (i32, i32) {
    %c0_i32 = arith.constant 0 : i32
    %c0_i32_0 = arith.constant 0 : i32
    return %arg0, %c0_i32 : i32, i32
  }
  func.func @transform_1(%arg0: i32) -> (i32, i32) {
    %c0_i32 = arith.constant 0 : i32
    %c0_i32_0 = arith.constant 0 : i32
    return %arg0, %c0_i32 : i32, i32
  }
  func.func @transform_2(%arg0: i32) -> (i32, i32) {
    %c0_i32 = arith.constant 0 : i32
    %c0_i32_0 = arith.constant 0 : i32
    %c0_i32_1 = arith.constant 0 : i32
    return %c0_i32, %c0_i32_0 : i32, i32
  }
  func.func @transform_3(%arg0: i32) -> (i32, i32) {
    %c0_i32 = arith.constant 0 : i32
    %c0_i32_0 = arith.constant 0 : i32
    %c0_i32_1 = arith.constant 0 : i32
    return %c0_i32, %c0_i32_0 : i32, i32
  }
  func.func @transform_4(%arg0: i32) -> (i32, i32) {
    %c0_i32 = arith.constant 0 : i32
    %c0_i32_0 = arith.constant 0 : i32
    %c0_i32_1 = arith.constant 0 : i32
    return %c0_i32, %c0_i32_0 : i32, i32
  }
  func.func @transform_5(%arg0: i32) -> (i32, i32) {
    %c0_i32 = arith.constant 0 : i32
    %c0_i32_0 = arith.constant 0 : i32
    return %arg0, %c0_i32 : i32, i32
  }
}

module attributes {stable_mosaic.version = 11 : i64} {
  func.func @gru_cell_kernel(%arg0: i32, %arg1: memref<8x128xbf16, #tpu.memory_space<vmem>>, %arg2: memref<8x128xbf16, #tpu.memory_space<vmem>>, %arg3: memref<128x384xbf16, #tpu.memory_space<vmem>>, %arg4: memref<128x256xbf16, #tpu.memory_space<vmem>>, %arg5: memref<128x128xbf16, #tpu.memory_space<vmem>>, %arg6: memref<8x128xf32, #tpu.memory_space<vmem>>) attributes {dimension_semantics = [#tpu.dimension_semantics<parallel>], iteration_bounds = array<i64: 2>, scalar_prefetch = 0 : i64, scratch_operands = 0 : i64, tpu.core_type = #tpu.core_type<tc>, window_params = [{transform_indices = @transform_0, window_bounds = array<i64: 8, 128>}, {transform_indices = @transform_1, window_bounds = array<i64: 8, 128>}, {pipeline_mode = #tpu.pipeline_mode<synchronous>, transform_indices = @transform_2, window_bounds = array<i64: 128, 384>}, {pipeline_mode = #tpu.pipeline_mode<synchronous>, transform_indices = @transform_3, window_bounds = array<i64: 128, 256>}, {pipeline_mode = #tpu.pipeline_mode<synchronous>, transform_indices = @transform_4, window_bounds = array<i64: 128, 128>}, {transform_indices = @transform_5, window_bounds = array<i64: 8, 128>}]} {
    %c0 = arith.constant 0 : index
    %c0_0 = arith.constant 0 : index
    %0 = vector.load %arg3[%c0, %c0_0] : memref<128x384xbf16, #tpu.memory_space<vmem>>, vector<128x384xbf16>
    %c0_1 = arith.constant 0 : index
    %c0_2 = arith.constant 0 : index
    %1 = vector.load %arg4[%c0_1, %c0_2] : memref<128x256xbf16, #tpu.memory_space<vmem>>, vector<128x256xbf16>
    %c0_3 = arith.constant 0 : index
    %c0_4 = arith.constant 0 : index
    %2 = vector.load %arg5[%c0_3, %c0_4] : memref<128x128xbf16, #tpu.memory_space<vmem>>, vector<128x128xbf16>
    %c0_5 = arith.constant 0 : index
    %c0_6 = arith.constant 0 : index
    %3 = vector.load %arg1[%c0_5, %c0_6] : memref<8x128xbf16, #tpu.memory_space<vmem>>, vector<8x128xbf16>
    %c0_7 = arith.constant 0 : index
    %c0_8 = arith.constant 0 : index
    %4 = vector.load %arg2[%c0_7, %c0_8] : memref<8x128xbf16, #tpu.memory_space<vmem>>, vector<8x128xbf16>
    %cst = arith.constant dense<0.000000e+00> : vector<8x384xf32>
    %5 = tpu.matmul %3, %0, %cst {dimension_numbers = #tpu.dot_dimension_numbers<[1], [0], [0], [1], [0, 0, 1, 1], [], []>} : vector<8x128xbf16>, vector<128x384xbf16>, vector<8x384xf32> -> vector<8x384xf32>
    %cst_9 = arith.constant dense<0.000000e+00> : vector<8x256xf32>
    %6 = tpu.matmul %4, %1, %cst_9 {dimension_numbers = #tpu.dot_dimension_numbers<[1], [0], [0], [1], [0, 0, 1, 1], [], []>} : vector<8x128xbf16>, vector<128x256xbf16>, vector<8x256xf32> -> vector<8x256xf32>
    %7 = vector.extract_strided_slice %5 {offsets = [0, 0], sizes = [8, 128], strides = [1, 1]} : vector<8x384xf32> to vector<8x128xf32>
    %8 = vector.extract_strided_slice %6 {offsets = [0, 0], sizes = [8, 128], strides = [1, 1]} : vector<8x256xf32> to vector<8x128xf32>
    %9 = arith.addf %7, %8 : vector<8x128xf32>
    %10 = arith.negf %9 : vector<8x128xf32>
    %11 = math.exp %10 : vector<8x128xf32>
    %cst_10 = arith.constant 1.000000e+00 : f32
    %12 = vector.broadcast %cst_10 : f32 to vector<8x128xf32>
    %13 = arith.addf %12, %11 : vector<8x128xf32>
    %14 = arith.divf %12, %13 : vector<8x128xf32>
    %15 = vector.extract_strided_slice %5 {offsets = [0, 128], sizes = [8, 128], strides = [1, 1]} : vector<8x384xf32> to vector<8x128xf32>
    %16 = vector.extract_strided_slice %6 {offsets = [0, 128], sizes = [8, 128], strides = [1, 1]} : vector<8x256xf32> to vector<8x128xf32>
    %17 = arith.addf %15, %16 : vector<8x128xf32>
    %18 = arith.negf %17 : vector<8x128xf32>
    %19 = math.exp %18 : vector<8x128xf32>
    %cst_11 = arith.constant 1.000000e+00 : f32
    %20 = vector.broadcast %cst_11 : f32 to vector<8x128xf32>
    %21 = arith.addf %20, %19 : vector<8x128xf32>
    %22 = arith.divf %20, %21 : vector<8x128xf32>
    %23 = arith.extf %4 : vector<8x128xbf16> to vector<8x128xf32>
    %24 = arith.mulf %22, %23 : vector<8x128xf32>
    %25 = arith.truncf %24 : vector<8x128xf32> to vector<8x128xbf16>
    %26 = vector.extract_strided_slice %5 {offsets = [0, 256], sizes = [8, 128], strides = [1, 1]} : vector<8x384xf32> to vector<8x128xf32>
    %cst_12 = arith.constant dense<0.000000e+00> : vector<8x128xf32>
    %27 = tpu.matmul %25, %2, %cst_12 {dimension_numbers = #tpu.dot_dimension_numbers<[1], [0], [0], [1], [0, 0, 1, 1], [], []>} : vector<8x128xbf16>, vector<128x128xbf16>, vector<8x128xf32> -> vector<8x128xf32>
    %28 = arith.addf %26, %27 : vector<8x128xf32>
    %29 = math.tanh %28 : vector<8x128xf32>
    %30 = arith.subf %29, %23 : vector<8x128xf32>
    %31 = arith.mulf %14, %30 : vector<8x128xf32>
    %32 = arith.addf %23, %31 : vector<8x128xf32>
    %c0_13 = arith.constant 0 : index
    %c0_14 = arith.constant 0 : index
    %33 = vector.load %arg6[%c0_13, %c0_14] : memref<8x128xf32, #tpu.memory_space<vmem>>, vector<8x128xf32>
    tpu.vector_store %arg6[%c0_13, %c0_14], %32 {strides = array<i32>} : memref<8x128xf32, #tpu.memory_space<vmem>>, vector<8x128xf32>,
    return
  }
  func.func @transform_0(%arg0: i32) -> (i32, i32) {
    %c0_i32 = arith.constant 0 : i32
    %c0_i32_0 = arith.constant 0 : i32
    return %arg0, %c0_i32 : i32, i32
  }
  func.func @transform_1(%arg0: i32) -> (i32, i32) {
    %c0_i32 = arith.constant 0 : i32
    %c0_i32_0 = arith.constant 0 : i32
    return %arg0, %c0_i32 : i32, i32
  }
  func.func @transform_2(%arg0: i32) -> (i32, i32) {
    %c0_i32 = arith.constant 0 : i32
    %c0_i32_0 = arith.constant 0 : i32
    %c0_i32_1 = arith.constant 0 : i32
    return %c0_i32, %c0_i32_0 : i32, i32
  }
  func.func @transform_3(%arg0: i32) -> (i32, i32) {
    %c0_i32 = arith.constant 0 : i32
    %c0_i32_0 = arith.constant 0 : i32
    %c0_i32_1 = arith.constant 0 : i32
    return %c0_i32, %c0_i32_0 : i32, i32
  }
  func.func @transform_4(%arg0: i32) -> (i32, i32) {
    %c0_i32 = arith.constant 0 : i32
    %c0_i32_0 = arith.constant 0 : i32
    %c0_i32_1 = arith.constant 0 : i32
    return %c0_i32, %c0_i32_0 : i32, i32
  }
  func.func @transform_5(%arg0: i32) -> (i32, i32) {
    %c0_i32 = arith.constant 0 : i32
    %c0_i32_0 = arith.constant 0 : i32
    return %arg0, %c0_i32 : i32, i32
  }
}

</mosaic_0001>

<llo_original>
// kernel: tpu_custom_call.1
$region0: #{tpu_custom_call.1}
  #allocation0 [shape = 'u32[]', space=smem, size = 0x4, offset = 0x4, fixed_abs, tag = 'smem constant byte address 0x4 - core index']
  #allocation1 [shape = 'u32[144,128]{1,0:T(1,128)}', space=vmem, size = 0x12000, scoped, tag = 'internal scratch']
  %s0 = inlined_call_operand.hbm [shape: bf16[16,128], index: 0, kind: input, shape index: {}]
  %s1 = inlined_call_operand.hbm [shape: bf16[16,128], index: 1, kind: input, shape index: {}]
  %s2 = inlined_call_operand.hbm [shape: bf16[128,384], index: 2, kind: input, shape index: {}]
  %s3 = inlined_call_operand.hbm [shape: bf16[128,256], index: 3, kind: input, shape index: {}]
  %s4 = inlined_call_operand.hbm [shape: bf16[128,128], index: 4, kind: input, shape index: {}]
  %s5 = inlined_call_operand.hbm [shape: f32[16,128], index: 5, kind: output, shape index: {}]
  %s6 = sld [smem:[#allocation0]]
  $region73: #{tpu_custom_call.1} parent=0
    _
  %s8 = ssub.s32 1, %s6
  %s9 = scalar_select 0, %s8, %s6
  $region1: #{tpu_custom_call.1} parent=0
    #allocation2 [shape = 'u8[4096]{0}', space=vmem, size = 0x1000, scoped, tag = 'input window, operand 0']
    #allocation3 [shape = 's32[2]{0}', space=sflag, size = 0x8, scoped, tag = 'scoped memory for tpu_custom_call.1']
    #allocation4 [shape = 's32[2]{0}', space=sflag, size = 0x8, scoped, tag = 'scoped memory for tpu_custom_call.1']
    #allocation5 [shape = 'u8[4096]{0}', space=vmem, size = 0x1000, scoped, tag = 'input window, operand 1']
    #allocation6 [shape = 's32[2]{0}', space=sflag, size = 0x8, scoped, tag = 'scoped memory for tpu_custom_call.1']
    #allocation7 [shape = 'u8[98304]{0}', space=vmem, size = 0x18000, scoped, tag = 'input window, operand 2, single buffered']
    #allocation8 [shape = 'u8[65536]{0}', space=vmem, size = 0x10000, scoped, tag = 'input window, operand 3, single buffered']
    #allocation9 [shape = 's32[1]{0}', space=sflag, size = 0x4, scoped, tag = 'scoped memory for tpu_custom_call.1']
    #allocation10 [shape = 'u8[32768]{0}', space=vmem, size = 0x8000, scoped, tag = 'input window, operand 4, single buffered']
    #allocation11 [shape = 'u8[8192]{0}', space=vmem, size = 0x2000, scoped, tag = 'output window, operand 0']
    %10 = vsyncpa [#allocation3], 0
    %s11 = scalar_lea.sflag [#allocation3], 1
    %12 = vsyncpa %s11, 0
    %13 = vsyncpa [#allocation6], 0
    %s14 = scalar_lea.sflag [#allocation6], 1
    %15 = vsyncpa %s14, 0
    %16 = vsyncpa [#allocation9], 0
    %17 = vsyncpa [#allocation4], 0
    %s18 = scalar_lea.sflag [#allocation4], 1
    %19 = vsyncpa %s18, 0
    loop: start=0, step=1, limit=4
    $region2: #{tpu_custom_call.1} parent=1 // loop_pre_header
      _
    $region3: #{tpu_custom_call.1} parent=1 // loop_header
      %s21 = sphi 0, %s25
      %p22 = scmp.ge.s32.totalorder %s21, 4
      %s31 = sphi 0, %s33
      %s34 = sphi 0, %s31
      %s35 = sphi 0, %s34
      %s51 = sphi 0, %s35
      %s57 = sphi 0, %s59
      %s60 = sphi 0, %s57
      %s61 = sphi 0, %s60
      %s77 = sphi 0, %s61
      %s81 = sphi 0, %s81
      %s83 = sphi 0, %s81
      %s84 = sphi 0, %s83
      %s98 = sphi 0, %s84
      %s102 = sphi 0, %s102
      %s104 = sphi 0, %s102
      %s105 = sphi 0, %s104
      %s119 = sphi 0, %s105
      %s123 = sphi 0, %s123
      %s125 = sphi 0, %s123
      %s126 = sphi 0, %s125
      %s140 = sphi 0, %s126
      %s146 = sphi 0, %s148
      %s149 = sphi 0, %s146
      %s150 = sphi 0, %s149
      %s166 = sphi 0, %s150
    $region4: #{tpu_custom_call.1} parent=1 // loop_header_branch
      %24 = sbr.rel (%p22) target = $region8
    $region5: #{tpu_custom_call.1} parent=1 // loop_body
      %s26 = ssub.s32 %s21, 1
      %s27 = ssub.s32 %s21, 2
      %s28 = sadd.s32 %s21, 1
      %s29 = ssub.s32 %s21, %s28
      %p30 = scmp.eq.s32.totalorder %s29, 0
      %s32 = sadd.s32 %s31, 1
      %s33 = scalar_select %p30, %s31, %s32
      %p36 = pneg %p30
      %p37 = scmp.eq.s32.totalorder %s21, 1
      %p38 = por %p36, %p37
      %p39 = scmp.ne.s32.totalorder %s31, %s34
      %p40 = scmp.eq.s32.totalorder %s21, 0
      %p41 = por %p39, %p40
      %p42 = scmp.ne.s32.totalorder %s31, %s34
      %p43 = scmp.eq.s32.totalorder %s26, 1
      %p44 = por %p42, %p43
      %p45 = scmp.ne.s32.totalorder %s34, %s35
      %p46 = scmp.eq.s32.totalorder %s26, 0
      %p47 = por %p45, %p46
      %p48 = scmp.ne.s32.totalorder %s34, %s35
      %p49 = scmp.eq.s32.totalorder %s27, 1
      %p50 = por %p48, %p49
      %p52 = scmp.ne.s32.totalorder %s35, %s51
      %p53 = scmp.eq.s32.totalorder %s27, 0
      %p54 = por %p52, %p53
      %s55 = ssub.s32 %s21, %s28
      %p56 = scmp.eq.s32.totalorder %s55, 0
      %s58 = sadd.s32 %s57, 1
      %s59 = scalar_select %p56, %s57, %s58
      %p62 = pneg %p56
      %p63 = scmp.eq.s32.totalorder %s21, 1
      %p64 = por %p62, %p63
      %p65 = scmp.ne.s32.totalorder %s57, %s60
      %p66 = scmp.eq.s32.totalorder %s21, 0
      %p67 = por %p65, %p66
      %p68 = scmp.ne.s32.totalorder %s57, %s60
      %p69 = scmp.eq.s32.totalorder %s26, 1
      %p70 = por %p68, %p69
      %p71 = scmp.ne.s32.totalorder %s60, %s61
      %p72 = scmp.eq.s32.totalorder %s26, 0
      %p73 = por %p71, %p72
      %p74 = scmp.ne.s32.totalorder %s60, %s61
      %p75 = scmp.eq.s32.totalorder %s27, 1
      %p76 = por %p74, %p75
      %p78 = scmp.ne.s32.totalorder %s61, %s77
      %p79 = scmp.eq.s32.totalorder %s27, 0
      %p80 = por %p78, %p79
      %s82 = sadd.s32 %s81, 1
      %p85 = scmp.eq.s32.totalorder %s21, 1
      %p86 = scmp.ne.s32.totalorder %s81, %s83
      %p87 = scmp.eq.s32.totalorder %s21, 0
      %p88 = por %p86, %p87
      %p89 = scmp.ne.s32.totalorder %s81, %s83
      %p90 = scmp.eq.s32.totalorder %s26, 1
      %p91 = por %p89, %p90
      %p92 = scmp.ne.s32.totalorder %s83, %s84
      %p93 = scmp.eq.s32.totalorder %s26, 0
      %p94 = por %p92, %p93
      %p95 = scmp.ne.s32.totalorder %s83, %s84
      %p96 = scmp.eq.s32.totalorder %s27, 1
      %p97 = por %p95, %p96
      %p99 = scmp.ne.s32.totalorder %s84, %s98
      %p100 = scmp.eq.s32.totalorder %s27, 0
      %p101 = por %p99, %p100
      %s103 = sadd.s32 %s102, 1
      %p106 = scmp.eq.s32.totalorder %s21, 1
      %p107 = scmp.ne.s32.totalorder %s102, %s104
      %p108 = scmp.eq.s32.totalorder %s21, 0
      %p109 = por %p107, %p108
      %p110 = scmp.ne.s32.totalorder %s102, %s104
      %p111 = scmp.eq.s32.totalorder %s26, 1
      %p112 = por %p110, %p111
      %p113 = scmp.ne.s32.totalorder %s104, %s105
      %p114 = scmp.eq.s32.totalorder %s26, 0
      %p115 = por %p113, %p114
      %p116 = scmp.ne.s32.totalorder %s104, %s105
      %p117 = scmp.eq.s32.totalorder %s27, 1
      %p118 = por %p116, %p117
      %p120 = scmp.ne.s32.totalorder %s105, %s119
      %p121 = scmp.eq.s32.totalorder %s27, 0
      %p122 = por %p120, %p121
      %s124 = sadd.s32 %s123, 1
      %p127 = scmp.eq.s32.totalorder %s21, 1
      %p128 = scmp.ne.s32.totalorder %s123, %s125
      %p129 = scmp.eq.s32.totalorder %s21, 0
      %p130 = por %p128, %p129
      %p131 = scmp.ne.s32.totalorder %s123, %s125
      %p132 = scmp.eq.s32.totalorder %s26, 1
      %p133 = por %p131, %p132
      %p134 = scmp.ne.s32.totalorder %s125, %s126
      %p135 = scmp.eq.s32.totalorder %s26, 0
      %p136 = por %p134, %p135
      %p137 = scmp.ne.s32.totalorder %s125, %s126
      %p138 = scmp.eq.s32.totalorder %s27, 1
      %p139 = por %p137, %p138
      %p141 = scmp.ne.s32.totalorder %s126, %s140
      %p142 = scmp.eq.s32.totalorder %s27, 0
      %p143 = por %p141, %p142
      %s144 = ssub.s32 %s21, %s28
      %p145 = scmp.eq.s32.totalorder %s144, 0
      %s147 = sadd.s32 %s146, 1
      %s148 = scalar_select %p145, %s146, %s147
      %p151 = pneg %p145
      %p152 = scmp.eq.s32.totalorder %s21, 1
      %p153 = por %p151, %p152
      %p154 = scmp.ne.s32.totalorder %s146, %s149
      %p155 = scmp.eq.s32.totalorder %s21, 0
      %p156 = por %p154, %p155
      %p157 = scmp.ne.s32.totalorder %s146, %s149
      %p158 = scmp.eq.s32.totalorder %s26, 1
      %p159 = por %p157, %p158
      %p160 = scmp.ne.s32.totalorder %s149, %s150
      %p161 = scmp.eq.s32.totalorder %s26, 0
      %p162 = por %p160, %p161
      %p163 = scmp.ne.s32.totalorder %s149, %s150
      %p164 = scmp.eq.s32.totalorder %s27, 1
      %p165 = por %p163, %p164
      %p167 = scmp.ne.s32.totalorder %s150, %s166
      %p168 = scmp.eq.s32.totalorder %s27, 0
      %p169 = por %p167, %p168
      %p170 = scmp.le.s32.totalorder 1, %s21
      %p171 = scmp.lt.s32.totalorder %s21, 3
      %p172 = pnand %p170, %p171
      %p173 = pneg %p172
      // Predicated region
      $region9: #{tpu_custom_call.1} parent=5 // pred_check
        _
      $region10: #{tpu_custom_call.1} parent=5 // pred_check_branch
        %175 = sbr.rel (%p172) target = $region12
      $region11: #{tpu_custom_call.1} parent=5 // pred_region
        %s176 = ssub.s32 %s21, 1
        // Predicated region
        $region13: #{tpu_custom_call.1} parent=11 // pred_check
          %p177 = pneg %p94
        $region14: #{tpu_custom_call.1} parent=11 // pred_check_branch
          %179 = sbr.rel (%p177) target = $region16
        $region15: #{tpu_custom_call.1} parent=11 // pred_region
          %s181 = ssub.s32 3072, 3072
          %182 = vsyncadd [#allocation6], %s181
          %s183 = sshll.u32 [#allocation7], 4
          %s184 = int_to_ptr.vmem [resolvable:$true] %s183
          %189 = dma.hbm_to_vmem [thread:$0]  %s2, 3072, %s184, [#allocation6], 192, 192, 12
        $region16: #{tpu_custom_call.1} parent=11 // pred_fallthru
          _
        // Predicated region
        $region17: #{tpu_custom_call.1} parent=11 // pred_check
          %p190 = pneg %p115
        $region18: #{tpu_custom_call.1} parent=11 // pred_check_branch
          %192 = sbr.rel (%p190) target = $region20
        $region19: #{tpu_custom_call.1} parent=11 // pred_region
          %s194 = ssub.s32 2048, 2048
          %195 = vsyncadd [#allocation9], %s194
          %s196 = sshll.u32 [#allocation8], 4
          %s197 = int_to_ptr.vmem [resolvable:$true] %s196
          %202 = dma.hbm_to_vmem [thread:$0]  %s3, 2048, %s197, [#allocation9], 128, 128, 8
        $region20: #{tpu_custom_call.1} parent=11 // pred_fallthru
          _
        // Predicated region
        $region21: #{tpu_custom_call.1} parent=11 // pred_check
          %p203 = pneg %p136
        $region22: #{tpu_custom_call.1} parent=11 // pred_check_branch
          %205 = sbr.rel (%p203) target = $region24
        $region23: #{tpu_custom_call.1} parent=11 // pred_region
          %s207 = ssub.s32 1024, 1024
          %208 = vsyncadd [#allocation9], %s207
          %s209 = sshll.u32 [#allocation10], 4
          %s210 = int_to_ptr.vmem [resolvable:$true] %s209
          %215 = dma.hbm_to_vmem [thread:$0]  %s4, 1024, %s210, [#allocation9], 64, 64, 4
        $region24: #{tpu_custom_call.1} parent=11 // pred_fallthru
          _
      $region12: #{tpu_custom_call.1} parent=5 // pred_fallthru
        _
      %p216 = scmp.lt.s32.totalorder %s21, 2
      // Predicated region
      $region25: #{tpu_custom_call.1} parent=5 // pred_check
        %p217 = pneg %p216
      $region26: #{tpu_custom_call.1} parent=5 // pred_check_branch
        %219 = sbr.rel (%p217) target = $region28
      $region27: #{tpu_custom_call.1} parent=5 // pred_region
        // Predicated region
        $region29: #{tpu_custom_call.1} parent=27 // pred_check
          %p220 = pneg %p41
        $region30: #{tpu_custom_call.1} parent=27 // pred_check_branch
          %222 = sbr.rel (%p220) target = $region32
        $region31: #{tpu_custom_call.1} parent=27 // pred_region
          %s223 = sand.u32 %s31, 1
          %s224 = scalar_lea.sflag [#allocation3], %s223
          %s225 = sand.u32 %s31, 1
          %s226 = smul.addr %s225, 4
          %s227 = scalar_lea.vmem [#allocation2], %s226
          %s229 = ssub.s32 64, 64
          %230 = vsyncadd %s224, %s229
          %s231 = smul.addr %s21, 64
          %s232 = scalar_lea.hbm %s0, %s231
          %s234 = sshll.u32 %s227, 4
          %s235 = int_to_ptr.vmem [resolvable:$true] %s234
          %237 = dma.hbm_to_vmem [thread:$0]  %s232, 64, %s235, %s224
        $region32: #{tpu_custom_call.1} parent=27 // pred_fallthru
          _
        // Predicated region
        $region33: #{tpu_custom_call.1} parent=27 // pred_check
          %p238 = pneg %p67
        $region34: #{tpu_custom_call.1} parent=27 // pred_check_branch
          %240 = sbr.rel (%p238) target = $region36
        $region35: #{tpu_custom_call.1} parent=27 // pred_region
          %s241 = sand.u32 %s21, 1
          %s242 = scalar_lea.sflag [#allocation6], %s241
          %s243 = sand.u32 %s57, 1
          %s244 = smul.addr %s243, 4
          %s245 = scalar_lea.vmem [#allocation5], %s244
          %s247 = ssub.s32 64, 64
          %248 = vsyncadd %s242, %s247
          %s249 = smul.addr %s21, 64
          %s250 = scalar_lea.hbm %s1, %s249
          %s252 = sshll.u32 %s245, 4
          %s253 = int_to_ptr.vmem [resolvable:$true] %s252
          %255 = dma.hbm_to_vmem [thread:$0]  %s250, 64, %s253, %s242
        $region36: #{tpu_custom_call.1} parent=27 // pred_fallthru
          _
      $region28: #{tpu_custom_call.1} parent=5 // pred_fallthru
        _
      %p256 = scmp.le.s32.totalorder 1, %s21
      %p257 = scmp.lt.s32.totalorder %s21, 3
      %p258 = pnand %p256, %p257
      %p259 = pneg %p258
      // Predicated region
      $region37: #{tpu_custom_call.1} parent=5 // pred_check
        _
      $region38: #{tpu_custom_call.1} parent=5 // pred_check_branch
        %261 = sbr.rel (%p258) target = $region40
      $region39: #{tpu_custom_call.1} parent=5 // pred_region
        %s262 = ssub.s32 %s21, 1
        %s263 = sand.u32 %s34, 1
        %s264 = scalar_lea.sflag [#allocation3], %s263
        %s265 = sand.u32 %s34, 1
        %s266 = smul.addr %s265, 4
        %s267 = scalar_lea.vmem [#allocation2], %s266
        // Predicated region
        $region41: #{tpu_custom_call.1} parent=39 // pred_check
          %p268 = pneg %p47
        $region42: #{tpu_custom_call.1} parent=39 // pred_check_branch
          %270 = sbr.rel (%p268) target = $region44
        $region43: #{tpu_custom_call.1} parent=39 // pred_region
          %271 = dma.done %s264, 64
        $region44: #{tpu_custom_call.1} parent=39 // pred_fallthru
          _
        %s272 = sand.u32 %s26, 1
        %s273 = scalar_lea.sflag [#allocation6], %s272
        %s274 = sand.u32 %s60, 1
        %s275 = smul.addr %s274, 4
        %s276 = scalar_lea.vmem [#allocation5], %s275
        // Predicated region
        $region45: #{tpu_custom_call.1} parent=39 // pred_check
          %p277 = pneg %p73
        $region46: #{tpu_custom_call.1} parent=39 // pred_check_branch
          %279 = sbr.rel (%p277) target = $region48
        $region47: #{tpu_custom_call.1} parent=39 // pred_region
          %280 = dma.done %s273, 64
        $region48: #{tpu_custom_call.1} parent=39 // pred_fallthru
          _
        // Predicated region
        $region49: #{tpu_custom_call.1} parent=39 // pred_check
          %p281 = pneg %p94
        $region50: #{tpu_custom_call.1} parent=39 // pred_check_branch
          %283 = sbr.rel (%p281) target = $region52
        $region51: #{tpu_custom_call.1} parent=39 // pred_region
          %284 = dma.done [#allocation6], 3072
        $region52: #{tpu_custom_call.1} parent=39 // pred_fallthru
          _
        // Predicated region
        $region53: #{tpu_custom_call.1} parent=39 // pred_check
          %p285 = pneg %p115
        $region54: #{tpu_custom_call.1} parent=39 // pred_check_branch
          %287 = sbr.rel (%p285) target = $region56
        $region55: #{tpu_custom_call.1} parent=39 // pred_region
          %288 = dma.done [#allocation9], 2048
        $region56: #{tpu_custom_call.1} parent=39 // pred_fallthru
          _
        // Predicated region
        $region57: #{tpu_custom_call.1} parent=39 // pred_check
          %p289 = pneg %p136
        $region58: #{tpu_custom_call.1} parent=39 // pred_check_branch
          %291 = sbr.rel (%p289) target = $region60
        $region59: #{tpu_custom_call.1} parent=39 // pred_region
          %292 = dma.done [#allocation9], 1024
        $region60: #{tpu_custom_call.1} parent=39 // pred_fallthru
          _
        %s293 = sand.u32 %s34, 1
        %s294 = scalar_lea.sflag [#allocation3], %s293
        %s295 = sand.u32 %s34, 1
        %s296 = smul.addr %s295, 4
        %s297 = scalar_lea.vmem [#allocation2], %s296
        %p298 = pneg %p47
        %p299 = pneg %p44
        %s300 = sand.u32 %s26, 1
        %s301 = scalar_lea.sflag [#allocation6], %s300
        %s302 = sand.u32 %s60, 1
        %s303 = smul.addr %s302, 4
        %s304 = scalar_lea.vmem [#allocation5], %s303
        %p305 = pneg %p73
        %p306 = pneg %p70
        %p307 = pneg %p94
        %p308 = pneg %p91
        %p309 = pneg %p115
        %p310 = pneg %p112
        %p311 = pneg %p136
        %p312 = pneg %p133
        %p313 = pneg %p162
        %p314 = pneg %p159
        %s315 = sand.u32 %s149, 1
        %s316 = scalar_lea.sflag [#allocation4], %s315
        %s317 = sand.u32 %s149, 1
        %s318 = smul.addr %s317, 8
        %s319 = scalar_lea.vmem [#allocation11], %s318
        %v321 = vld [vmem:[#allocation7] sm:$0xff]
        %v322 = vld [vmem:[#allocation7 + $0x8] sm:$0xf]
        %v323 = vld [vmem:[#allocation7 + $0xc] sm:$0xff]
        %v324 = vld [vmem:[#allocation7 + $0x14] sm:$0xf]
        %v325 = vld [vmem:[#allocation7 + $0x18] sm:$0xff]
        %v326 = vld [vmem:[#allocation7 + $0x20] sm:$0xf]
        %v327 = vld [vmem:[#allocation7 + $0x24] sm:$0xff]
        %v328 = vld [vmem:[#allocation7 + $0x2c] sm:$0xf]
        %v329 = vld [vmem:[#allocation7 + $0x30] sm:$0xff]
        %v330 = vld [vmem:[#allocation7 + $0x38] sm:$0xf]
        %v331 = vld [vmem:[#allocation7 + $0x3c] sm:$0xff]
        %v332 = vld [vmem:[#allocation7 + $0x44] sm:$0xf]
        %v333 = vld [vmem:[#allocation7 + $0x48] sm:$0xff]
        %v334 = vld [vmem:[#allocation7 + $0x50] sm:$0xf]
        %v335 = vld [vmem:[#allocation7 + $0x54] sm:$0xff]
        %v336 = vld [vmem:[#allocation7 + $0x5c] sm:$0xf]
        %v337 = vld [vmem:[#allocation7 + $0x60] sm:$0xff]
        %v338 = vld [vmem:[#allocation7 + $0x68] sm:$0xf]
        %v339 = vld [vmem:[#allocation7 + $0x6c] sm:$0xff]
        %v340 = vld [vmem:[#allocation7 + $0x74] sm:$0xf]
        %v341 = vld [vmem:[#allocation7 + $0x78] sm:$0xff]
        %v342 = vld [vmem:[#allocation7 + $0x80] sm:$0xf]
        %v343 = vld [vmem:[#allocation7 + $0x84] sm:$0xff]
        %v344 = vld [vmem:[#allocation7 + $0x8c] sm:$0xf]
        %v345 = vld [vmem:[#allocation7 + $0x90] sm:$0xff]
        %v346 = vld [vmem:[#allocation7 + $0x98] sm:$0xf]
        %v347 = vld [vmem:[#allocation7 + $0x9c] sm:$0xff]
        %v348 = vld [vmem:[#allocation7 + $0xa4] sm:$0xf]
        %v349 = vld [vmem:[#allocation7 + $0xa8] sm:$0xff]
        %v350 = vld [vmem:[#allocation7 + $0xb0] sm:$0xf]
        %v351 = vld [vmem:[#allocation7 + $0xb4] sm:$0xff]
        %v352 = vld [vmem:[#allocation7 + $0xbc] sm:$0xf]
        %v353 = vld [vmem:[#allocation8] sm:$0xff]
        %v354 = vld [vmem:[#allocation8 + $0x8] sm:$0xff]
        %v355 = vld [vmem:[#allocation8 + $0x10] sm:$0xff]
        %v356 = vld [vmem:[#allocation8 + $0x18] sm:$0xff]
        %v357 = vld [vmem:[#allocation8 + $0x20] sm:$0xff]
        %v358 = vld [vmem:[#allocation8 + $0x28] sm:$0xff]
        %v359 = vld [vmem:[#allocation8 + $0x30] sm:$0xff]
        %v360 = vld [vmem:[#allocation8 + $0x38] sm:$0xff]
        %v361 = vld [vmem:[#allocation8 + $0x40] sm:$0xff]
        %v362 = vld [vmem:[#allocation8 + $0x48] sm:$0xff]
        %v363 = vld [vmem:[#allocation8 + $0x50] sm:$0xff]
        %v364 = vld [vmem:[#allocation8 + $0x58] sm:$0xff]
        %v365 = vld [vmem:[#allocation8 + $0x60] sm:$0xff]
        %v366 = vld [vmem:[#allocation8 + $0x68] sm:$0xff]
        %v367 = vld [vmem:[#allocation8 + $0x70] sm:$0xff]
        %v368 = vld [vmem:[#allocation8 + $0x78] sm:$0xff]
        %v369 = vld [vmem:[#allocation10] sm:$0xf]
        %v370 = vld [vmem:[#allocation10 + $0x4] sm:$0xf]
        %v371 = vld [vmem:[#allocation10 + $0x8] sm:$0xf]
        %v372 = vld [vmem:[#allocation10 + $0xc] sm:$0xf]
        %v373 = vld [vmem:[#allocation10 + $0x10] sm:$0xf]
        %v374 = vld [vmem:[#allocation10 + $0x14] sm:$0xf]
        %v375 = vld [vmem:[#allocation10 + $0x18] sm:$0xf]
        %v376 = vld [vmem:[#allocation10 + $0x1c] sm:$0xf]
        %v377 = vld [vmem:[#allocation10 + $0x20] sm:$0xf]
        %v378 = vld [vmem:[#allocation10 + $0x24] sm:$0xf]
        %v379 = vld [vmem:[#allocation10 + $0x28] sm:$0xf]
        %v380 = vld [vmem:[#allocation10 + $0x2c] sm:$0xf]
        %v381 = vld [vmem:[#allocation10 + $0x30] sm:$0xf]
        %v382 = vld [vmem:[#allocation10 + $0x34] sm:$0xf]
        %v383 = vld [vmem:[#allocation10 + $0x38] sm:$0xf]
        %v384 = vld [vmem:[#allocation10 + $0x3c] sm:$0xf]
        %v385 = vld [vmem:[%s267] sm:$0xf]
        %v386 = vld [vmem:[%s276] sm:$0xf]
        %v419 = vunpack.c.l.b16 %v321
        %v420 = vunpack.c.h.b16 %v321
        %v421 = vunpack.c.l.b16 %v322
        %v422 = vunpack.c.l.b16 %v323
        %v423 = vunpack.c.h.b16 %v323
        %v424 = vunpack.c.l.b16 %v324
        %v425 = vunpack.c.l.b16 %v325
        %v426 = vunpack.c.h.b16 %v325
        %v427 = vunpack.c.l.b16 %v326
        %v428 = vunpack.c.l.b16 %v327
        %v429 = vunpack.c.h.b16 %v327
        %v430 = vunpack.c.l.b16 %v328
        %v431 = vunpack.c.l.b16 %v329
        %v432 = vunpack.c.h.b16 %v329
        %v433 = vunpack.c.l.b16 %v330
        %v434 = vunpack.c.l.b16 %v331
        %v435 = vunpack.c.h.b16 %v331
        %v436 = vunpack.c.l.b16 %v332
        %v437 = vunpack.c.l.b16 %v333
        %v438 = vunpack.c.h.b16 %v333
        %v439 = vunpack.c.l.b16 %v334
        %v440 = vunpack.c.l.b16 %v335
        %v441 = vunpack.c.h.b16 %v335
        %v442 = vunpack.c.l.b16 %v336
        %v443 = vunpack.c.l.b16 %v337
        %v444 = vunpack.c.h.b16 %v337
        %v445 = vunpack.c.l.b16 %v338
        %v446 = vunpack.c.l.b16 %v339
        %v447 = vunpack.c.h.b16 %v339
        %v448 = vunpack.c.l.b16 %v340
        %v449 = vunpack.c.l.b16 %v341
        %v450 = vunpack.c.h.b16 %v341
        %v451 = vunpack.c.l.b16 %v342
        %v452 = vunpack.c.l.b16 %v343
        %v453 = vunpack.c.h.b16 %v343
        %v454 = vunpack.c.l.b16 %v344
        %v455 = vunpack.c.l.b16 %v345
        %v456 = vunpack.c.h.b16 %v345
        %v457 = vunpack.c.l.b16 %v346
        %v458 = vunpack.c.l.b16 %v347
        %v459 = vunpack.c.h.b16 %v347
        %v460 = vunpack.c.l.b16 %v348
        %v461 = vunpack.c.l.b16 %v349
        %v462 = vunpack.c.h.b16 %v349
        %v463 = vunpack.c.l.b16 %v350
        %v464 = vunpack.c.l.b16 %v351
        %v465 = vunpack.c.h.b16 %v351
        %v466 = vunpack.c.l.b16 %v352
        %v467 = vpack.c.b16 %v422, %v419
        %v468 = vpack.c.b16 %v423, %v420
        %v469 = vpack.c.b16 %v424, %v421
        %v470 = vpack.c.b16 %v428, %v425
        %v471 = vpack.c.b16 %v429, %v426
        %v472 = vpack.c.b16 %v430, %v427
        %v473 = vpack.c.b16 %v434, %v431
        %v474 = vpack.c.b16 %v435, %v432
        %v475 = vpack.c.b16 %v436, %v433
        %v476 = vpack.c.b16 %v440, %v437
        %v477 = vpack.c.b16 %v441, %v438
        %v478 = vpack.c.b16 %v442, %v439
        %v479 = vpack.c.b16 %v446, %v443
        %v480 = vpack.c.b16 %v447, %v444
        %v481 = vpack.c.b16 %v448, %v445
        %v482 = vpack.c.b16 %v452, %v449
        %v483 = vpack.c.b16 %v453, %v450
        %v484 = vpack.c.b16 %v454, %v451
        %v485 = vpack.c.b16 %v458, %v455
        %v486 = vpack.c.b16 %v459, %v456
        %v487 = vpack.c.b16 %v460, %v457
        %v488 = vpack.c.b16 %v464, %v461
        %v489 = vpack.c.b16 %v465, %v462
        %v490 = vpack.c.b16 %v466, %v463
        %515 = vmatprep.subr.bf16.mxu0 %v468
        %516 = vmatpush1.bf16.msra.mxu0 %v467
        %517 = vmatprep.subr.bf16.mxu0 %v471
        %518 = vmatpush1.bf16.msra.mxu0 %v470
        %519 = vmatprep.subr.bf16.mxu0 %v474
        %520 = vmatpush1.bf16.msra.mxu0 %v473
        %521 = vmatprep.subr.bf16.mxu0 %v477
        %522 = vmatpush1.bf16.msra.mxu0 %v476
        %523 = vmatprep.subr.bf16.mxu0 %v480
        %524 = vmatpush1.bf16.msra.mxu0 %v479
        %525 = vmatprep.subr.bf16.mxu0 %v483
        %526 = vmatpush1.bf16.msra.mxu0 %v482
        %527 = vmatprep.subr.bf16.mxu0 %v486
        %528 = vmatpush1.bf16.msra.mxu0 %v485
        %529 = vmatprep.subr.bf16.mxu0 %v489
        %530 = vmatpush1.bf16.msra.mxu0 %v488
        %531 = vmatprep.subr.bf16.mxu0 0
        %532 = vmatpush1.bf16.msra.mxu0 0
        %533 = vmatprep.subr.bf16.mxu0 0
        %534 = vmatpush1.bf16.msra.mxu0 0
        %535 = vmatprep.subr.bf16.mxu0 0
        %536 = vmatpush1.bf16.msra.mxu0 0
        %537 = vmatprep.subr.bf16.mxu0 0
        %538 = vmatpush1.bf16.msra.mxu0 0
        %539 = vmatprep.subr.bf16.mxu0 0
        %540 = vmatpush1.bf16.msra.mxu0 0
        %541 = vmatprep.subr.bf16.mxu0 0
        %542 = vmatpush1.bf16.msra.mxu0 0
        %543 = vmatprep.subr.bf16.mxu0 0
        %544 = vmatpush1.bf16.msra.mxu0 0
        %545 = vmatprep.subr.bf16.mxu0 0
        %546 = vmatpush1.bf16.msra.mxu0 0
        %547 = vmatprep.mubr.bf16.mxu0 0
        %548 = vmatmul.mubr.bf16.gmra.mrb[0].mxu0 %v385
        %v549 = vpop.f32.mrb[0].mxu0
        %v550 = vadd.f32 0.0, %v549
        %v551 = vpop.f32.mrb[0].mxu0
        %v552 = vadd.f32 0.0, %v551
        %v553 = vpop.f32.mrb[0].mxu0
        %v554 = vpop.f32.mrb[0].mxu0
        %555 = vdwg.mxu0
        %556 = vmatprep.subr.bf16.mxu0 0
        %557 = vmatpush1.bf16.msra.mxu0 %v469
        %558 = vmatprep.subr.bf16.mxu0 0
        %559 = vmatpush1.bf16.msra.mxu0 %v472
        %560 = vmatprep.subr.bf16.mxu0 0
        %561 = vmatpush1.bf16.msra.mxu0 %v475
        %562 = vmatprep.subr.bf16.mxu0 0
        %563 = vmatpush1.bf16.msra.mxu0 %v478
        %564 = vmatprep.subr.bf16.mxu0 0
        %565 = vmatpush1.bf16.msra.mxu0 %v481
        %566 = vmatprep.subr.bf16.mxu0 0
        %567 = vmatpush1.bf16.msra.mxu0 %v484
        %568 = vmatprep.subr.bf16.mxu0 0
        %569 = vmatpush1.bf16.msra.mxu0 %v487
        %570 = vmatprep.subr.bf16.mxu0 0
        %571 = vmatpush1.bf16.msra.mxu0 %v490
        %572 = vmatprep.subr.bf16.mxu0 0
        %573 = vmatpush1.bf16.msra.mxu0 0
        %574 = vmatprep.subr.bf16.mxu0 0
        %575 = vmatpush1.bf16.msra.mxu0 0
        %576 = vmatprep.subr.bf16.mxu0 0
        %577 = vmatpush1.bf16.msra.mxu0 0
        %578 = vmatprep.subr.bf16.mxu0 0
        %579 = vmatpush1.bf16.msra.mxu0 0
        %580 = vmatprep.subr.bf16.mxu0 0
        %581 = vmatpush1.bf16.msra.mxu0 0
        %582 = vmatprep.subr.bf16.mxu0 0
        %583 = vmatpush1.bf16.msra.mxu0 0
        %584 = vmatprep.subr.bf16.mxu0 0
        %585 = vmatpush1.bf16.msra.mxu0 0
        %586 = vmatprep.subr.bf16.mxu0 0
        %587 = vmatpush1.bf16.msra.mxu0 0
        %588 = vmatprep.mubr.bf16.mxu0 0
        %589 = vmatmul.mubr.bf16.gmra.mrb[0].mxu0 %v385
        %v590 = vpop.f32.mrb[0].mxu0
        %v591 = vadd.f32 0.0, %v590
        %v592 = vpop.f32.mrb[0].mxu0
        %v593 = vpop.f32.mrb[0].mxu0
        %v594 = vpop.f32.mrb[0].mxu0
        %595 = vdwg.mxu0
        %v612 = vunpack.c.l.b16 %v353
        %v613 = vunpack.c.h.b16 %v353
        %v614 = vunpack.c.l.b16 %v354
        %v615 = vunpack.c.h.b16 %v354
        %v616 = vunpack.c.l.b16 %v355
        %v617 = vunpack.c.h.b16 %v355
        %v618 = vunpack.c.l.b16 %v356
        %v619 = vunpack.c.h.b16 %v356
        %v620 = vunpack.c.l.b16 %v357
        %v621 = vunpack.c.h.b16 %v357
        %v622 = vunpack.c.l.b16 %v358
        %v623 = vunpack.c.h.b16 %v358
        %v624 = vunpack.c.l.b16 %v359
        %v625 = vunpack.c.h.b16 %v359
        %v626 = vunpack.c.l.b16 %v360
        %v627 = vunpack.c.h.b16 %v360
        %v628 = vunpack.c.l.b16 %v361
        %v629 = vunpack.c.h.b16 %v361
        %v630 = vunpack.c.l.b16 %v362
        %v631 = vunpack.c.h.b16 %v362
        %v632 = vunpack.c.l.b16 %v363
        %v633 = vunpack.c.h.b16 %v363
        %v634 = vunpack.c.l.b16 %v364
        %v635 = vunpack.c.h.b16 %v364
        %v636 = vunpack.c.l.b16 %v365
        %v637 = vunpack.c.h.b16 %v365
        %v638 = vunpack.c.l.b16 %v366
        %v639 = vunpack.c.h.b16 %v366
        %v640 = vunpack.c.l.b16 %v367
        %v641 = vunpack.c.h.b16 %v367
        %v642 = vunpack.c.l.b16 %v368
        %v643 = vunpack.c.h.b16 %v368
        %v644 = vpack.c.b16 %v614, %v612
        %v645 = vpack.c.b16 %v615, %v613
        %v646 = vpack.c.b16 %v618, %v616
        %v647 = vpack.c.b16 %v619, %v617
        %v648 = vpack.c.b16 %v622, %v620
        %v649 = vpack.c.b16 %v623, %v621
        %v650 = vpack.c.b16 %v626, %v624
        %v651 = vpack.c.b16 %v627, %v625
        %v652 = vpack.c.b16 %v630, %v628
        %v653 = vpack.c.b16 %v631, %v629
        %v654 = vpack.c.b16 %v634, %v632
        %v655 = vpack.c.b16 %v635, %v633
        %v656 = vpack.c.b16 %v638, %v636
        %v657 = vpack.c.b16 %v639, %v637
        %v658 = vpack.c.b16 %v642, %v640
        %v659 = vpack.c.b16 %v643, %v641
        %676 = vmatprep.subr.bf16.mxu0 %v645
        %677 = vmatpush1.bf16.msra.mxu0 %v644
        %678 = vmatprep.subr.bf16.mxu0 %v647
        %679 = vmatpush1.bf16.msra.mxu0 %v646
        %680 = vmatprep.subr.bf16.mxu0 %v649
        %681 = vmatpush1.bf16.msra.mxu0 %v648
        %682 = vmatprep.subr.bf16.mxu0 %v651
        %683 = vmatpush1.bf16.msra.mxu0 %v650
        %684 = vmatprep.subr.bf16.mxu0 %v653
        %685 = vmatpush1.bf16.msra.mxu0 %v652
        %686 = vmatprep.subr.bf16.mxu0 %v655
        %687 = vmatpush1.bf16.msra.mxu0 %v654
        %688 = vmatprep.subr.bf16.mxu0 %v657
        %689 = vmatpush1.bf16.msra.mxu0 %v656
        %690 = vmatprep.subr.bf16.mxu0 %v659
        %691 = vmatpush1.bf16.msra.mxu0 %v658
        %692 = vmatprep.subr.bf16.mxu0 0
        %693 = vmatpush1.bf16.msra.mxu0 0
        %694 = vmatprep.subr.bf16.mxu0 0
        %695 = vmatpush1.bf16.msra.mxu0 0
        %696 = vmatprep.subr.bf16.mxu0 0
        %697 = vmatpush1.bf16.msra.mxu0 0
        %698 = vmatprep.subr.bf16.mxu0 0
        %699 = vmatpush1.bf16.msra.mxu0 0
        %700 = vmatprep.subr.bf16.mxu0 0
        %701 = vmatpush1.bf16.msra.mxu0 0
        %702 = vmatprep.subr.bf16.mxu0 0
        %703 = vmatpush1.bf16.msra.mxu0 0
        %704 = vmatprep.subr.bf16.mxu0 0
        %705 = vmatpush1.bf16.msra.mxu0 0
        %706 = vmatprep.subr.bf16.mxu0 0
        %707 = vmatpush1.bf16.msra.mxu0 0
        %708 = vmatprep.mubr.bf16.mxu0 0
        %709 = vmatmul.mubr.bf16.gmra.mrb[0].mxu0 %v386
        %v710 = vpop.f32.mrb[0].mxu0
        %v711 = vadd.f32 0.0, %v710
        %v712 = vpop.f32.mrb[0].mxu0
        %v713 = vadd.f32 0.0, %v712
        %v714 = vpop.f32.mrb[0].mxu0
        %v715 = vpop.f32.mrb[0].mxu0
        %716 = vdwg.mxu0
        %v717 = vadd.f32 %v550, %v711
        %v718 = vxor.u32 %v717, 2147483648
        %v719 = vmul.f32 %v718, 1.442695
        %v720 = vpow.pop %v719
        %v721 = vadd.f32 %v720, 1.0
        %v722 = vrcp.pop %v721
        %v723 = vmul.f32 1.0, %v722
        %v724 = vadd.f32 %v552, %v713
        %v725 = vxor.u32 %v724, 2147483648
        %v726 = vmul.f32 %v725, 1.442695
        %v727 = vpow.pop %v726
        %v728 = vadd.f32 %v727, 1.0
        %v729 = vrcp.pop %v728
        %v730 = vmul.f32 1.0, %v729
        %v731 = vunpack.c.l.bf16 %v386
        %v732 = vmul.f32 %v730, %v731
        %v733 = vpack.c.bf16 %v732, %v732
        %v750 = vunpack.c.l.b16 %v369
        %v751 = vunpack.c.l.b16 %v370
        %v752 = vunpack.c.l.b16 %v371
        %v753 = vunpack.c.l.b16 %v372
        %v754 = vunpack.c.l.b16 %v373
        %v755 = vunpack.c.l.b16 %v374
        %v756 = vunpack.c.l.b16 %v375
        %v757 = vunpack.c.l.b16 %v376
        %v758 = vunpack.c.l.b16 %v377
        %v759 = vunpack.c.l.b16 %v378
        %v760 = vunpack.c.l.b16 %v379
        %v761 = vunpack.c.l.b16 %v380
        %v762 = vunpack.c.l.b16 %v381
        %v763 = vunpack.c.l.b16 %v382
        %v764 = vunpack.c.l.b16 %v383
        %v765 = vunpack.c.l.b16 %v384
        %v766 = vpack.c.b16 %v751, %v750
        %v767 = vpack.c.b16 %v753, %v752
        %v768 = vpack.c.b16 %v755, %v754
        %v769 = vpack.c.b16 %v757, %v756
        %v770 = vpack.c.b16 %v759, %v758
        %v771 = vpack.c.b16 %v761, %v760
        %v772 = vpack.c.b16 %v763, %v762
        %v773 = vpack.c.b16 %v765, %v764
        %782 = vmatprep.subr.bf16.mxu0 0
        %783 = vmatpush1.bf16.msra.mxu0 %v766
        %784 = vmatprep.subr.bf16.mxu0 0
        %785 = vmatpush1.bf16.msra.mxu0 %v767
        %786 = vmatprep.subr.bf16.mxu0 0
        %787 = vmatpush1.bf16.msra.mxu0 %v768
        %788 = vmatprep.subr.bf16.mxu0 0
        %789 = vmatpush1.bf16.msra.mxu0 %v769
        %790 = vmatprep.subr.bf16.mxu0 0
        %791 = vmatpush1.bf16.msra.mxu0 %v770
        %792 = vmatprep.subr.bf16.mxu0 0
        %793 = vmatpush1.bf16.msra.mxu0 %v771
        %794 = vmatprep.subr.bf16.mxu0 0
        %795 = vmatpush1.bf16.msra.mxu0 %v772
        %796 = vmatprep.subr.bf16.mxu0 0
        %797 = vmatpush1.bf16.msra.mxu0 %v773
        %798 = vmatprep.subr.bf16.mxu0 0
        %799 = vmatpush1.bf16.msra.mxu0 0
        %800 = vmatprep.subr.bf16.mxu0 0
        %801 = vmatpush1.bf16.msra.mxu0 0
        %802 = vmatprep.subr.bf16.mxu0 0
        %803 = vmatpush1.bf16.msra.mxu0 0
        %804 = vmatprep.subr.bf16.mxu0 0
        %805 = vmatpush1.bf16.msra.mxu0 0
        %806 = vmatprep.subr.bf16.mxu0 0
        %807 = vmatpush1.bf16.msra.mxu0 0
        %808 = vmatprep.subr.bf16.mxu0 0
        %809 = vmatpush1.bf16.msra.mxu0 0
        %810 = vmatprep.subr.bf16.mxu0 0
        %811 = vmatpush1.bf16.msra.mxu0 0
        %812 = vmatprep.subr.bf16.mxu0 0
        %813 = vmatpush1.bf16.msra.mxu0 0
        %814 = vmatprep.mubr.bf16.mxu0 0
        %815 = vmatmul.mubr.bf16.gmra.mrb[0].mxu0 %v733
        %v816 = vpop.f32.mrb[0].mxu0
        %v817 = vadd.f32 0.0, %v816
        %v818 = vpop.f32.mrb[0].mxu0
        %v819 = vpop.f32.mrb[0].mxu0
        %v820 = vpop.f32.mrb[0].mxu0
        %821 = vdwg.mxu0
        %v822 = vadd.f32 %v591, %v817
        %v823 = vtanh.pop %v822
        %v824 = vsub.f32 %v823, %v731
        %v825 = vmul.f32 %v723, %v824
        %v826 = vadd.f32 %v731, %v825
        %827 = vst [vmem:[%s319] sm:$0xff] %v826
        %s828 = sand.u32 %s149, 1
        %s829 = scalar_lea.sflag [#allocation4], %s828
        %s830 = sand.u32 %s149, 1
        %s831 = smul.addr %s830, 8
        %s832 = scalar_lea.vmem [#allocation11], %s831
        // Predicated region
        $region61: #{tpu_custom_call.1} parent=39 // pred_check
          %p833 = pneg %p159
        $region62: #{tpu_custom_call.1} parent=39 // pred_check_branch
          %835 = sbr.rel (%p833) target = $region64
        $region63: #{tpu_custom_call.1} parent=39 // pred_region
          %s837 = ssub.s32 128, 128
          %838 = vsyncadd %s829, %s837
          %s839 = smul.addr %s26, 128
          %s840 = scalar_lea.hbm %s5, %s839
          %s842 = sshll.u32 %s832, 4
          %s843 = int_to_ptr.vmem [resolvable:$true] %s842
          %845 = dma.vmem_to_hbm [thread:$0]  %s843, 128, %s840, %s829
        $region64: #{tpu_custom_call.1} parent=39 // pred_fallthru
          _
      $region40: #{tpu_custom_call.1} parent=5 // pred_fallthru
        _
      %p846 = scmp.le.s32.totalorder 2, %s21
      // Predicated region
      $region65: #{tpu_custom_call.1} parent=5 // pred_check
        %p847 = pneg %p846
      $region66: #{tpu_custom_call.1} parent=5 // pred_check_branch
        %849 = sbr.rel (%p847) target = $region68
      $region67: #{tpu_custom_call.1} parent=5 // pred_region
        %s850 = ssub.s32 %s21, 2
        // Predicated region
        $region69: #{tpu_custom_call.1} parent=67 // pred_check
          %p851 = pneg %p165
        $region70: #{tpu_custom_call.1} parent=67 // pred_check_branch
          %853 = sbr.rel (%p851) target = $region72
        $region71: #{tpu_custom_call.1} parent=67 // pred_region
          %s854 = sand.u32 %s150, 1
          %s855 = scalar_lea.sflag [#allocation4], %s854
          %s856 = sand.u32 %s150, 1
          %s857 = smul.addr %s856, 8
          %s858 = scalar_lea.vmem [#allocation11], %s857
          %859 = dma.done %s855, 128
        $region72: #{tpu_custom_call.1} parent=67 // pred_fallthru
          _
      $region68: #{tpu_custom_call.1} parent=5 // pred_fallthru
        _
    $region6: #{tpu_custom_call.1} parent=1 // loop_footer
      %s25 = sadd.s32 1, %s21
    $region7: #{tpu_custom_call.1} parent=1 // loop_footer_branch
      %20 = sbr.rel target = $region3
    $region8: #{tpu_custom_call.1} parent=1 // loop_exit
      _
    %860 = vsyncpa [#allocation3], 1
    %s861 = scalar_lea.sflag [#allocation3], 1
    %862 = vsyncpa %s861, 1
    %863 = vsyncpa [#allocation6], 1
    %s864 = scalar_lea.sflag [#allocation6], 1
    %865 = vsyncpa %s864, 1
    %866 = vsyncpa [#allocation9], 1
    %867 = vsyncpa [#allocation4], 1
    %s868 = scalar_lea.sflag [#allocation4], 1
    %869 = vsyncpa %s868, 1

// kernel: tpu_custom_call.1
$region0: #{tpu_custom_call.1}
  #allocation0 [shape = 'u32[]', space=smem, size = 0x4, offset = 0x4, fixed_abs, tag = 'smem constant byte address 0x4 - core index']
  #allocation1 [shape = 'u32[144,128]{1,0:T(1,128)}', space=vmem, size = 0x12000, scoped, tag = 'internal scratch']
  %s0 = inlined_call_operand.hbm [shape: bf16[16,128], index: 0, kind: input, shape index: {}]
  %s1 = inlined_call_operand.hbm [shape: bf16[16,128], index: 1, kind: input, shape index: {}]
  %s2 = inlined_call_operand.hbm [shape: bf16[128,384], index: 2, kind: input, shape index: {}]
  %s3 = inlined_call_operand.hbm [shape: bf16[128,256], index: 3, kind: input, shape index: {}]
  %s4 = inlined_call_operand.hbm [shape: bf16[128,128], index: 4, kind: input, shape index: {}]
  %s5 = inlined_call_operand.hbm [shape: f32[16,128], index: 5, kind: output, shape index: {}]
  %s6 = sld [smem:[#allocation0]]
  $region73: #{tpu_custom_call.1} parent=0
    _
  %s8 = ssub.s32 1, %s6
  %s9 = scalar_select 0, %s8, %s6
  $region1: #{tpu_custom_call.1} parent=0
    #allocation2 [shape = 'u8[4096]{0}', space=vmem, size = 0x1000, scoped, tag = 'input window, operand 0']
    #allocation3 [shape = 's32[2]{0}', space=sflag, size = 0x8, scoped, tag = 'scoped memory for tpu_custom_call.1']
    #allocation4 [shape = 's32[2]{0}', space=sflag, size = 0x8, scoped, tag = 'scoped memory for tpu_custom_call.1']
    #allocation5 [shape = 'u8[4096]{0}', space=vmem, size = 0x1000, scoped, tag = 'input window, operand 1']
    #allocation6 [shape = 's32[2]{0}', space=sflag, size = 0x8, scoped, tag = 'scoped memory for tpu_custom_call.1']
    #allocation7 [shape = 'u8[98304]{0}', space=vmem, size = 0x18000, scoped, tag = 'input window, operand 2, single buffered']
    #allocation8 [shape = 'u8[65536]{0}', space=vmem, size = 0x10000, scoped, tag = 'input window, operand 3, single buffered']
    #allocation9 [shape = 's32[1]{0}', space=sflag, size = 0x4, scoped, tag = 'scoped memory for tpu_custom_call.1']
    #allocation10 [shape = 'u8[32768]{0}', space=vmem, size = 0x8000, scoped, tag = 'input window, operand 4, single buffered']
    #allocation11 [shape = 'u8[8192]{0}', space=vmem, size = 0x2000, scoped, tag = 'output window, operand 0']
    %10 = vsyncpa [#allocation3], 0
    %s11 = scalar_lea.sflag [#allocation3], 1
    %12 = vsyncpa %s11, 0
    %13 = vsyncpa [#allocation6], 0
    %s14 = scalar_lea.sflag [#allocation6], 1
    %15 = vsyncpa %s14, 0
    %16 = vsyncpa [#allocation9], 0
    %17 = vsyncpa [#allocation4], 0
    %s18 = scalar_lea.sflag [#allocation4], 1
    %19 = vsyncpa %s18, 0
    loop: start=0, step=1, limit=4
    $region2: #{tpu_custom_call.1} parent=1 // loop_pre_header
      _
    $region3: #{tpu_custom_call.1} parent=1 // loop_header
      %s21 = sphi 0, %s25
      %p22 = scmp.ge.s32.totalorder %s21, 4
      %s31 = sphi 0, %s33
      %s34 = sphi 0, %s31
      %s35 = sphi 0, %s34
      %s51 = sphi 0, %s35
      %s57 = sphi 0, %s59
      %s60 = sphi 0, %s57
      %s61 = sphi 0, %s60
      %s77 = sphi 0, %s61
      %s81 = sphi 0, %s81
      %s83 = sphi 0, %s81
      %s84 = sphi 0, %s83
      %s98 = sphi 0, %s84
      %s102 = sphi 0, %s102
      %s104 = sphi 0, %s102
      %s105 = sphi 0, %s104
      %s119 = sphi 0, %s105
      %s123 = sphi 0, %s123
      %s125 = sphi 0, %s123
      %s126 = sphi 0, %s125
      %s140 = sphi 0, %s126
      %s146 = sphi 0, %s148
      %s149 = sphi 0, %s146
      %s150 = sphi 0, %s149
      %s166 = sphi 0, %s150
    $region4: #{tpu_custom_call.1} parent=1 // loop_header_branch
      %24 = sbr.rel (%p22) target = $region8
    $region5: #{tpu_custom_call.1} parent=1 // loop_body
      %s26 = ssub.s32 %s21, 1
      %s27 = ssub.s32 %s21, 2
      %s28 = sadd.s32 %s21, 1
      %s29 = ssub.s32 %s21, %s28
      %p30 = scmp.eq.s32.totalorder %s29, 0
      %s32 = sadd.s32 %s31, 1
      %s33 = scalar_select %p30, %s31, %s32
      %p36 = pneg %p30
      %p37 = scmp.eq.s32.totalorder %s21, 1
      %p38 = por %p36, %p37
      %p39 = scmp.ne.s32.totalorder %s31, %s34
      %p40 = scmp.eq.s32.totalorder %s21, 0
      %p41 = por %p39, %p40
      %p42 = scmp.ne.s32.totalorder %s31, %s34
      %p43 = scmp.eq.s32.totalorder %s26, 1
      %p44 = por %p42, %p43
      %p45 = scmp.ne.s32.totalorder %s34, %s35
      %p46 = scmp.eq.s32.totalorder %s26, 0
      %p47 = por %p45, %p46
      %p48 = scmp.ne.s32.totalorder %s34, %s35
      %p49 = scmp.eq.s32.totalorder %s27, 1
      %p50 = por %p48, %p49
      %p52 = scmp.ne.s32.totalorder %s35, %s51
      %p53 = scmp.eq.s32.totalorder %s27, 0
      %p54 = por %p52, %p53
      %s55 = ssub.s32 %s21, %s28
      %p56 = scmp.eq.s32.totalorder %s55, 0
      %s58 = sadd.s32 %s57, 1
      %s59 = scalar_select %p56, %s57, %s58
      %p62 = pneg %p56
      %p63 = scmp.eq.s32.totalorder %s21, 1
      %p64 = por %p62, %p63
      %p65 = scmp.ne.s32.totalorder %s57, %s60
      %p66 = scmp.eq.s32.totalorder %s21, 0
      %p67 = por %p65, %p66
      %p68 = scmp.ne.s32.totalorder %s57, %s60
      %p69 = scmp.eq.s32.totalorder %s26, 1
      %p70 = por %p68, %p69
      %p71 = scmp.ne.s32.totalorder %s60, %s61
      %p72 = scmp.eq.s32.totalorder %s26, 0
      %p73 = por %p71, %p72
      %p74 = scmp.ne.s32.totalorder %s60, %s61
      %p75 = scmp.eq.s32.totalorder %s27, 1
      %p76 = por %p74, %p75
      %p78 = scmp.ne.s32.totalorder %s61, %s77
      %p79 = scmp.eq.s32.totalorder %s27, 0
      %p80 = por %p78, %p79
      %s82 = sadd.s32 %s81, 1
      %p85 = scmp.eq.s32.totalorder %s21, 1
      %p86 = scmp.ne.s32.totalorder %s81, %s83
      %p87 = scmp.eq.s32.totalorder %s21, 0
      %p88 = por %p86, %p87
      %p89 = scmp.ne.s32.totalorder %s81, %s83
      %p90 = scmp.eq.s32.totalorder %s26, 1
      %p91 = por %p89, %p90
      %p92 = scmp.ne.s32.totalorder %s83, %s84
      %p93 = scmp.eq.s32.totalorder %s26, 0
      %p94 = por %p92, %p93
      %p95 = scmp.ne.s32.totalorder %s83, %s84
      %p96 = scmp.eq.s32.totalorder %s27, 1
      %p97 = por %p95, %p96
      %p99 = scmp.ne.s32.totalorder %s84, %s98
      %p100 = scmp.eq.s32.totalorder %s27, 0
      %p101 = por %p99, %p100
      %s103 = sadd.s32 %s102, 1
      %p106 = scmp.eq.s32.totalorder %s21, 1
      %p107 = scmp.ne.s32.totalorder %s102, %s104
      %p108 = scmp.eq.s32.totalorder %s21, 0
      %p109 = por %p107, %p108
      %p110 = scmp.ne.s32.totalorder %s102, %s104
      %p111 = scmp.eq.s32.totalorder %s26, 1
      %p112 = por %p110, %p111
      %p113 = scmp.ne.s32.totalorder %s104, %s105
      %p114 = scmp.eq.s32.totalorder %s26, 0
      %p115 = por %p113, %p114
      %p116 = scmp.ne.s32.totalorder %s104, %s105
      %p117 = scmp.eq.s32.totalorder %s27, 1
      %p118 = por %p116, %p117
      %p120 = scmp.ne.s32.totalorder %s105, %s119
      %p121 = scmp.eq.s32.totalorder %s27, 0
      %p122 = por %p120, %p121
      %s124 = sadd.s32 %s123, 1
      %p127 = scmp.eq.s32.totalorder %s21, 1
      %p128 = scmp.ne.s32.totalorder %s123, %s125
      %p129 = scmp.eq.s32.totalorder %s21, 0
      %p130 = por %p128, %p129
      %p131 = scmp.ne.s32.totalorder %s123, %s125
      %p132 = scmp.eq.s32.totalorder %s26, 1
      %p133 = por %p131, %p132
      %p134 = scmp.ne.s32.totalorder %s125, %s126
      %p135 = scmp.eq.s32.totalorder %s26, 0
      %p136 = por %p134, %p135
      %p137 = scmp.ne.s32.totalorder %s125, %s126
      %p138 = scmp.eq.s32.totalorder %s27, 1
      %p139 = por %p137, %p138
      %p141 = scmp.ne.s32.totalorder %s126, %s140
      %p142 = scmp.eq.s32.totalorder %s27, 0
      %p143 = por %p141, %p142
      %s144 = ssub.s32 %s21, %s28
      %p145 = scmp.eq.s32.totalorder %s144, 0
      %s147 = sadd.s32 %s146, 1
      %s148 = scalar_select %p145, %s146, %s147
      %p151 = pneg %p145
      %p152 = scmp.eq.s32.totalorder %s21, 1
      %p153 = por %p151, %p152
      %p154 = scmp.ne.s32.totalorder %s146, %s149
      %p155 = scmp.eq.s32.totalorder %s21, 0
      %p156 = por %p154, %p155
      %p157 = scmp.ne.s32.totalorder %s146, %s149
      %p158 = scmp.eq.s32.totalorder %s26, 1
      %p159 = por %p157, %p158
      %p160 = scmp.ne.s32.totalorder %s149, %s150
      %p161 = scmp.eq.s32.totalorder %s26, 0
      %p162 = por %p160, %p161
      %p163 = scmp.ne.s32.totalorder %s149, %s150
      %p164 = scmp.eq.s32.totalorder %s27, 1
      %p165 = por %p163, %p164
      %p167 = scmp.ne.s32.totalorder %s150, %s166
      %p168 = scmp.eq.s32.totalorder %s27, 0
      %p169 = por %p167, %p168
      %p170 = scmp.le.s32.totalorder 1, %s21
      %p171 = scmp.lt.s32.totalorder %s21, 3
      %p172 = pnand %p170, %p171
      %p173 = pneg %p172
      // Predicated region
      $region9: #{tpu_custom_call.1} parent=5 // pred_check
        _
      $region10: #{tpu_custom_call.1} parent=5 // pred_check_branch
        %175 = sbr.rel (%p172) target = $region12
      $region11: #{tpu_custom_call.1} parent=5 // pred_region
        %s176 = ssub.s32 %s21, 1
        // Predicated region
        $region13: #{tpu_custom_call.1} parent=11 // pred_check
          %p177 = pneg %p94
        $region14: #{tpu_custom_call.1} parent=11 // pred_check_branch
          %179 = sbr.rel (%p177) target = $region16
        $region15: #{tpu_custom_call.1} parent=11 // pred_region
          %s181 = ssub.s32 3072, 3072
          %182 = vsyncadd [#allocation6], %s181
          %s183 = sshll.u32 [#allocation7], 4
          %s184 = int_to_ptr.vmem [resolvable:$true] %s183
          %189 = dma.hbm_to_vmem [thread:$0]  %s2, 3072, %s184, [#allocation6], 192, 192, 12
        $region16: #{tpu_custom_call.1} parent=11 // pred_fallthru
          _
        // Predicated region
        $region17: #{tpu_custom_call.1} parent=11 // pred_check
          %p190 = pneg %p115
        $region18: #{tpu_custom_call.1} parent=11 // pred_check_branch
          %192 = sbr.rel (%p190) target = $region20
        $region19: #{tpu_custom_call.1} parent=11 // pred_region
          %s194 = ssub.s32 2048, 2048
          %195 = vsyncadd [#allocation9], %s194
          %s196 = sshll.u32 [#allocation8], 4
          %s197 = int_to_ptr.vmem [resolvable:$true] %s196
          %202 = dma.hbm_to_vmem [thread:$0]  %s3, 2048, %s197, [#allocation9], 128, 128, 8
        $region20: #{tpu_custom_call.1} parent=11 // pred_fallthru
          _
        // Predicated region
        $region21: #{tpu_custom_call.1} parent=11 // pred_check
          %p203 = pneg %p136
        $region22: #{tpu_custom_call.1} parent=11 // pred_check_branch
          %205 = sbr.rel (%p203) target = $region24
        $region23: #{tpu_custom_call.1} parent=11 // pred_region
          %s207 = ssub.s32 1024, 1024
          %208 = vsyncadd [#allocation9], %s207
          %s209 = sshll.u32 [#allocation10], 4
          %s210 = int_to_ptr.vmem [resolvable:$true] %s209
          %215 = dma.hbm_to_vmem [thread:$0]  %s4, 1024, %s210, [#allocation9], 64, 64, 4
        $region24: #{tpu_custom_call.1} parent=11 // pred_fallthru
          _
      $region12: #{tpu_custom_call.1} parent=5 // pred_fallthru
        _
      %p216 = scmp.lt.s32.totalorder %s21, 2
      // Predicated region
      $region25: #{tpu_custom_call.1} parent=5 // pred_check
        %p217 = pneg %p216
      $region26: #{tpu_custom_call.1} parent=5 // pred_check_branch
        %219 = sbr.rel (%p217) target = $region28
      $region27: #{tpu_custom_call.1} parent=5 // pred_region
        // Predicated region
        $region29: #{tpu_custom_call.1} parent=27 // pred_check
          %p220 = pneg %p41
        $region30: #{tpu_custom_call.1} parent=27 // pred_check_branch
          %222 = sbr.rel (%p220) target = $region32
        $region31: #{tpu_custom_call.1} parent=27 // pred_region
          %s223 = sand.u32 %s31, 1
          %s224 = scalar_lea.sflag [#allocation3], %s223
          %s225 = sand.u32 %s31, 1
          %s226 = smul.addr %s225, 4
          %s227 = scalar_lea.vmem [#allocation2], %s226
          %s229 = ssub.s32 64, 64
          %230 = vsyncadd %s224, %s229
          %s231 = smul.addr %s21, 64
          %s232 = scalar_lea.hbm %s0, %s231
          %s234 = sshll.u32 %s227, 4
          %s235 = int_to_ptr.vmem [resolvable:$true] %s234
          %237 = dma.hbm_to_vmem [thread:$0]  %s232, 64, %s235, %s224
        $region32: #{tpu_custom_call.1} parent=27 // pred_fallthru
          _
        // Predicated region
        $region33: #{tpu_custom_call.1} parent=27 // pred_check
          %p238 = pneg %p67
        $region34: #{tpu_custom_call.1} parent=27 // pred_check_branch
          %240 = sbr.rel (%p238) target = $region36
        $region35: #{tpu_custom_call.1} parent=27 // pred_region
          %s241 = sand.u32 %s21, 1
          %s242 = scalar_lea.sflag [#allocation6], %s241
          %s243 = sand.u32 %s57, 1
          %s244 = smul.addr %s243, 4
          %s245 = scalar_lea.vmem [#allocation5], %s244
          %s247 = ssub.s32 64, 64
          %248 = vsyncadd %s242, %s247
          %s249 = smul.addr %s21, 64
          %s250 = scalar_lea.hbm %s1, %s249
          %s252 = sshll.u32 %s245, 4
          %s253 = int_to_ptr.vmem [resolvable:$true] %s252
          %255 = dma.hbm_to_vmem [thread:$0]  %s250, 64, %s253, %s242
        $region36: #{tpu_custom_call.1} parent=27 // pred_fallthru
          _
      $region28: #{tpu_custom_call.1} parent=5 // pred_fallthru
        _
      %p256 = scmp.le.s32.totalorder 1, %s21
      %p257 = scmp.lt.s32.totalorder %s21, 3
      %p258 = pnand %p256, %p257
      %p259 = pneg %p258
      // Predicated region
      $region37: #{tpu_custom_call.1} parent=5 // pred_check
        _
      $region38: #{tpu_custom_call.1} parent=5 // pred_check_branch
        %261 = sbr.rel (%p258) target = $region40
      $region39: #{tpu_custom_call.1} parent=5 // pred_region
        %s262 = ssub.s32 %s21, 1
        %s263 = sand.u32 %s34, 1
        %s264 = scalar_lea.sflag [#allocation3], %s263
        %s265 = sand.u32 %s34, 1
        %s266 = smul.addr %s265, 4
        %s267 = scalar_lea.vmem [#allocation2], %s266
        // Predicated region
        $region41: #{tpu_custom_call.1} parent=39 // pred_check
          %p268 = pneg %p47
        $region42: #{tpu_custom_call.1} parent=39 // pred_check_branch
          %270 = sbr.rel (%p268) target = $region44
        $region43: #{tpu_custom_call.1} parent=39 // pred_region
          %271 = dma.done %s264, 64
        $region44: #{tpu_custom_call.1} parent=39 // pred_fallthru
          _
        %s272 = sand.u32 %s26, 1
        %s273 = scalar_lea.sflag [#allocation6], %s272
        %s274 = sand.u32 %s60, 1
        %s275 = smul.addr %s274, 4
        %s276 = scalar_lea.vmem [#allocation5], %s275
        // Predicated region
        $region45: #{tpu_custom_call.1} parent=39 // pred_check
          %p277 = pneg %p73
        $region46: #{tpu_custom_call.1} parent=39 // pred_check_branch
          %279 = sbr.rel (%p277) target = $region48
        $region47: #{tpu_custom_call.1} parent=39 // pred_region
          %280 = dma.done %s273, 64
        $region48: #{tpu_custom_call.1} parent=39 // pred_fallthru
          _
        // Predicated region
        $region49: #{tpu_custom_call.1} parent=39 // pred_check
          %p281 = pneg %p94
        $region50: #{tpu_custom_call.1} parent=39 // pred_check_branch
          %283 = sbr.rel (%p281) target = $region52
        $region51: #{tpu_custom_call.1} parent=39 // pred_region
          %284 = dma.done [#allocation6], 3072
        $region52: #{tpu_custom_call.1} parent=39 // pred_fallthru
          _
        // Predicated region
        $region53: #{tpu_custom_call.1} parent=39 // pred_check
          %p285 = pneg %p115
        $region54: #{tpu_custom_call.1} parent=39 // pred_check_branch
          %287 = sbr.rel (%p285) target = $region56
        $region55: #{tpu_custom_call.1} parent=39 // pred_region
          %288 = dma.done [#allocation9], 2048
        $region56: #{tpu_custom_call.1} parent=39 // pred_fallthru
          _
        // Predicated region
        $region57: #{tpu_custom_call.1} parent=39 // pred_check
          %p289 = pneg %p136
        $region58: #{tpu_custom_call.1} parent=39 // pred_check_branch
          %291 = sbr.rel (%p289) target = $region60
        $region59: #{tpu_custom_call.1} parent=39 // pred_region
          %292 = dma.done [#allocation9], 1024
        $region60: #{tpu_custom_call.1} parent=39 // pred_fallthru
          _
        %s293 = sand.u32 %s34, 1
        %s294 = scalar_lea.sflag [#allocation3], %s293
        %s295 = sand.u32 %s34, 1
        %s296 = smul.addr %s295, 4
        %s297 = scalar_lea.vmem [#allocation2], %s296
        %p298 = pneg %p47
        %p299 = pneg %p44
        %s300 = sand.u32 %s26, 1
        %s301 = scalar_lea.sflag [#allocation6], %s300
        %s302 = sand.u32 %s60, 1
        %s303 = smul.addr %s302, 4
        %s304 = scalar_lea.vmem [#allocation5], %s303
        %p305 = pneg %p73
        %p306 = pneg %p70
        %p307 = pneg %p94
        %p308 = pneg %p91
        %p309 = pneg %p115
        %p310 = pneg %p112
        %p311 = pneg %p136
        %p312 = pneg %p133
        %p313 = pneg %p162
        %p314 = pneg %p159
        %s315 = sand.u32 %s149, 1
        %s316 = scalar_lea.sflag [#allocation4], %s315
        %s317 = sand.u32 %s149, 1
        %s318 = smul.addr %s317, 8
        %s319 = scalar_lea.vmem [#allocation11], %s318
        %v321 = vld [vmem:[#allocation7] sm:$0xff]
        %v322 = vld [vmem:[#allocation7 + $0x8] sm:$0xf]
        %v323 = vld [vmem:[#allocation7 + $0xc] sm:$0xff]
        %v324 = vld [vmem:[#allocation7 + $0x14] sm:$0xf]
        %v325 = vld [vmem:[#allocation7 + $0x18] sm:$0xff]
        %v326 = vld [vmem:[#allocation7 + $0x20] sm:$0xf]
        %v327 = vld [vmem:[#allocation7 + $0x24] sm:$0xff]
        %v328 = vld [vmem:[#allocation7 + $0x2c] sm:$0xf]
        %v329 = vld [vmem:[#allocation7 + $0x30] sm:$0xff]
        %v330 = vld [vmem:[#allocation7 + $0x38] sm:$0xf]
        %v331 = vld [vmem:[#allocation7 + $0x3c] sm:$0xff]
        %v332 = vld [vmem:[#allocation7 + $0x44] sm:$0xf]
        %v333 = vld [vmem:[#allocation7 + $0x48] sm:$0xff]
        %v334 = vld [vmem:[#allocation7 + $0x50] sm:$0xf]
        %v335 = vld [vmem:[#allocation7 + $0x54] sm:$0xff]
        %v336 = vld [vmem:[#allocation7 + $0x5c] sm:$0xf]
        %v337 = vld [vmem:[#allocation7 + $0x60] sm:$0xff]
        %v338 = vld [vmem:[#allocation7 + $0x68] sm:$0xf]
        %v339 = vld [vmem:[#allocation7 + $0x6c] sm:$0xff]
        %v340 = vld [vmem:[#allocation7 + $0x74] sm:$0xf]
        %v341 = vld [vmem:[#allocation7 + $0x78] sm:$0xff]
        %v342 = vld [vmem:[#allocation7 + $0x80] sm:$0xf]
        %v343 = vld [vmem:[#allocation7 + $0x84] sm:$0xff]
        %v344 = vld [vmem:[#allocation7 + $0x8c] sm:$0xf]
        %v345 = vld [vmem:[#allocation7 + $0x90] sm:$0xff]
        %v346 = vld [vmem:[#allocation7 + $0x98] sm:$0xf]
        %v347 = vld [vmem:[#allocation7 + $0x9c] sm:$0xff]
        %v348 = vld [vmem:[#allocation7 + $0xa4] sm:$0xf]
        %v349 = vld [vmem:[#allocation7 + $0xa8] sm:$0xff]
        %v350 = vld [vmem:[#allocation7 + $0xb0] sm:$0xf]
        %v351 = vld [vmem:[#allocation7 + $0xb4] sm:$0xff]
        %v352 = vld [vmem:[#allocation7 + $0xbc] sm:$0xf]
        %v353 = vld [vmem:[#allocation8] sm:$0xff]
        %v354 = vld [vmem:[#allocation8 + $0x8] sm:$0xff]
        %v355 = vld [vmem:[#allocation8 + $0x10] sm:$0xff]
        %v356 = vld [vmem:[#allocation8 + $0x18] sm:$0xff]
        %v357 = vld [vmem:[#allocation8 + $0x20] sm:$0xff]
        %v358 = vld [vmem:[#allocation8 + $0x28] sm:$0xff]
        %v359 = vld [vmem:[#allocation8 + $0x30] sm:$0xff]
        %v360 = vld [vmem:[#allocation8 + $0x38] sm:$0xff]
        %v361 = vld [vmem:[#allocation8 + $0x40] sm:$0xff]
        %v362 = vld [vmem:[#allocation8 + $0x48] sm:$0xff]
        %v363 = vld [vmem:[#allocation8 + $0x50] sm:$0xff]
        %v364 = vld [vmem:[#allocation8 + $0x58] sm:$0xff]
        %v365 = vld [vmem:[#allocation8 + $0x60] sm:$0xff]
        %v366 = vld [vmem:[#allocation8 + $0x68] sm:$0xff]
        %v367 = vld [vmem:[#allocation8 + $0x70] sm:$0xff]
        %v368 = vld [vmem:[#allocation8 + $0x78] sm:$0xff]
        %v369 = vld [vmem:[#allocation10] sm:$0xf]
        %v370 = vld [vmem:[#allocation10 + $0x4] sm:$0xf]
        %v371 = vld [vmem:[#allocation10 + $0x8] sm:$0xf]
        %v372 = vld [vmem:[#allocation10 + $0xc] sm:$0xf]
        %v373 = vld [vmem:[#allocation10 + $0x10] sm:$0xf]
        %v374 = vld [vmem:[#allocation10 + $0x14] sm:$0xf]
        %v375 = vld [vmem:[#allocation10 + $0x18] sm:$0xf]
        %v376 = vld [vmem:[#allocation10 + $0x1c] sm:$0xf]
        %v377 = vld [vmem:[#allocation10 + $0x20] sm:$0xf]
        %v378 = vld [vmem:[#allocation10 + $0x24] sm:$0xf]
        %v379 = vld [vmem:[#allocation10 + $0x28] sm:$0xf]
        %v380 = vld [vmem:[#allocation10 + $0x2c] sm:$0xf]
        %v381 = vld [vmem:[#allocation10 + $0x30] sm:$0xf]
        %v382 = vld [vmem:[#allocation10 + $0x34] sm:$0xf]
        %v383 = vld [vmem:[#allocation10 + $0x38] sm:$0xf]
        %v384 = vld [vmem:[#allocation10 + $0x3c] sm:$0xf]
        %v385 = vld [vmem:[%s267] sm:$0xf]
        %v386 = vld [vmem:[%s276] sm:$0xf]
        %v419 = vunpack.c.l.b16 %v321
        %v420 = vunpack.c.h.b16 %v321
        %v421 = vunpack.c.l.b16 %v322
        %v422 = vunpack.c.l.b16 %v323
        %v423 = vunpack.c.h.b16 %v323
        %v424 = vunpack.c.l.b16 %v324
        %v425 = vunpack.c.l.b16 %v325
        %v426 = vunpack.c.h.b16 %v325
        %v427 = vunpack.c.l.b16 %v326
        %v428 = vunpack.c.l.b16 %v327
        %v429 = vunpack.c.h.b16 %v327
        %v430 = vunpack.c.l.b16 %v328
        %v431 = vunpack.c.l.b16 %v329
        %v432 = vunpack.c.h.b16 %v329
        %v433 = vunpack.c.l.b16 %v330
        %v434 = vunpack.c.l.b16 %v331
        %v435 = vunpack.c.h.b16 %v331
        %v436 = vunpack.c.l.b16 %v332
        %v437 = vunpack.c.l.b16 %v333
        %v438 = vunpack.c.h.b16 %v333
        %v439 = vunpack.c.l.b16 %v334
        %v440 = vunpack.c.l.b16 %v335
        %v441 = vunpack.c.h.b16 %v335
        %v442 = vunpack.c.l.b16 %v336
        %v443 = vunpack.c.l.b16 %v337
        %v444 = vunpack.c.h.b16 %v337
        %v445 = vunpack.c.l.b16 %v338
        %v446 = vunpack.c.l.b16 %v339
        %v447 = vunpack.c.h.b16 %v339
        %v448 = vunpack.c.l.b16 %v340
        %v449 = vunpack.c.l.b16 %v341
        %v450 = vunpack.c.h.b16 %v341
        %v451 = vunpack.c.l.b16 %v342
        %v452 = vunpack.c.l.b16 %v343
        %v453 = vunpack.c.h.b16 %v343
        %v454 = vunpack.c.l.b16 %v344
        %v455 = vunpack.c.l.b16 %v345
        %v456 = vunpack.c.h.b16 %v345
        %v457 = vunpack.c.l.b16 %v346
        %v458 = vunpack.c.l.b16 %v347
        %v459 = vunpack.c.h.b16 %v347
        %v460 = vunpack.c.l.b16 %v348
        %v461 = vunpack.c.l.b16 %v349
        %v462 = vunpack.c.h.b16 %v349
        %v463 = vunpack.c.l.b16 %v350
        %v464 = vunpack.c.l.b16 %v351
        %v465 = vunpack.c.h.b16 %v351
        %v466 = vunpack.c.l.b16 %v352
        %v467 = vpack.c.b16 %v422, %v419
        %v468 = vpack.c.b16 %v423, %v420
        %v469 = vpack.c.b16 %v424, %v421
        %v470 = vpack.c.b16 %v428, %v425
        %v471 = vpack.c.b16 %v429, %v426
        %v472 = vpack.c.b16 %v430, %v427
        %v473 = vpack.c.b16 %v434, %v431
        %v474 = vpack.c.b16 %v435, %v432
        %v475 = vpack.c.b16 %v436, %v433
        %v476 = vpack.c.b16 %v440, %v437
        %v477 = vpack.c.b16 %v441, %v438
        %v478 = vpack.c.b16 %v442, %v439
        %v479 = vpack.c.b16 %v446, %v443
        %v480 = vpack.c.b16 %v447, %v444
        %v481 = vpack.c.b16 %v448, %v445
        %v482 = vpack.c.b16 %v452, %v449
        %v483 = vpack.c.b16 %v453, %v450
        %v484 = vpack.c.b16 %v454, %v451
        %v485 = vpack.c.b16 %v458, %v455
        %v486 = vpack.c.b16 %v459, %v456
        %v487 = vpack.c.b16 %v460, %v457
        %v488 = vpack.c.b16 %v464, %v461
        %v489 = vpack.c.b16 %v465, %v462
        %v490 = vpack.c.b16 %v466, %v463
        %515 = vmatprep.subr.bf16.mxu0 %v468
        %516 = vmatpush1.bf16.msra.mxu0 %v467
        %517 = vmatprep.subr.bf16.mxu0 %v471
        %518 = vmatpush1.bf16.msra.mxu0 %v470
        %519 = vmatprep.subr.bf16.mxu0 %v474
        %520 = vmatpush1.bf16.msra.mxu0 %v473
        %521 = vmatprep.subr.bf16.mxu0 %v477
        %522 = vmatpush1.bf16.msra.mxu0 %v476
        %523 = vmatprep.subr.bf16.mxu0 %v480
        %524 = vmatpush1.bf16.msra.mxu0 %v479
        %525 = vmatprep.subr.bf16.mxu0 %v483
        %526 = vmatpush1.bf16.msra.mxu0 %v482
        %527 = vmatprep.subr.bf16.mxu0 %v486
        %528 = vmatpush1.bf16.msra.mxu0 %v485
        %529 = vmatprep.subr.bf16.mxu0 %v489
        %530 = vmatpush1.bf16.msra.mxu0 %v488
        %531 = vmatprep.subr.bf16.mxu0 0
        %532 = vmatpush1.bf16.msra.mxu0 0
        %533 = vmatprep.subr.bf16.mxu0 0
        %534 = vmatpush1.bf16.msra.mxu0 0
        %535 = vmatprep.subr.bf16.mxu0 0
        %536 = vmatpush1.bf16.msra.mxu0 0
        %537 = vmatprep.subr.bf16.mxu0 0
        %538 = vmatpush1.bf16.msra.mxu0 0
        %539 = vmatprep.subr.bf16.mxu0 0
        %540 = vmatpush1.bf16.msra.mxu0 0
        %541 = vmatprep.subr.bf16.mxu0 0
        %542 = vmatpush1.bf16.msra.mxu0 0
        %543 = vmatprep.subr.bf16.mxu0 0
        %544 = vmatpush1.bf16.msra.mxu0 0
        %545 = vmatprep.subr.bf16.mxu0 0
        %546 = vmatpush1.bf16.msra.mxu0 0
        %547 = vmatprep.mubr.bf16.mxu0 0
        %548 = vmatmul.mubr.bf16.gmra.mrb[0].mxu0 %v385
        %v549 = vpop.f32.mrb[0].mxu0
        %v550 = vadd.f32 0.0, %v549
        %v551 = vpop.f32.mrb[0].mxu0
        %v552 = vadd.f32 0.0, %v551
        %v553 = vpop.f32.mrb[0].mxu0
        %v554 = vpop.f32.mrb[0].mxu0
        %555 = vdwg.mxu0
        %556 = vmatprep.subr.bf16.mxu0 0
        %557 = vmatpush1.bf16.msra.mxu0 %v469
        %558 = vmatprep.subr.bf16.mxu0 0
        %559 = vmatpush1.bf16.msra.mxu0 %v472
        %560 = vmatprep.subr.bf16.mxu0 0
        %561 = vmatpush1.bf16.msra.mxu0 %v475
        %562 = vmatprep.subr.bf16.mxu0 0
        %563 = vmatpush1.bf16.msra.mxu0 %v478
        %564 = vmatprep.subr.bf16.mxu0 0
        %565 = vmatpush1.bf16.msra.mxu0 %v481
        %566 = vmatprep.subr.bf16.mxu0 0
        %567 = vmatpush1.bf16.msra.mxu0 %v484
        %568 = vmatprep.subr.bf16.mxu0 0
        %569 = vmatpush1.bf16.msra.mxu0 %v487
        %570 = vmatprep.subr.bf16.mxu0 0
        %571 = vmatpush1.bf16.msra.mxu0 %v490
        %572 = vmatprep.subr.bf16.mxu0 0
        %573 = vmatpush1.bf16.msra.mxu0 0
        %574 = vmatprep.subr.bf16.mxu0 0
        %575 = vmatpush1.bf16.msra.mxu0 0
        %576 = vmatprep.subr.bf16.mxu0 0
        %577 = vmatpush1.bf16.msra.mxu0 0
        %578 = vmatprep.subr.bf16.mxu0 0
        %579 = vmatpush1.bf16.msra.mxu0 0
        %580 = vmatprep.subr.bf16.mxu0 0
        %581 = vmatpush1.bf16.msra.mxu0 0
        %582 = vmatprep.subr.bf16.mxu0 0
        %583 = vmatpush1.bf16.msra.mxu0 0
        %584 = vmatprep.subr.bf16.mxu0 0
        %585 = vmatpush1.bf16.msra.mxu0 0
        %586 = vmatprep.subr.bf16.mxu0 0
        %587 = vmatpush1.bf16.msra.mxu0 0
        %588 = vmatprep.mubr.bf16.mxu0 0
        %589 = vmatmul.mubr.bf16.gmra.mrb[0].mxu0 %v385
        %v590 = vpop.f32.mrb[0].mxu0
        %v591 = vadd.f32 0.0, %v590
        %v592 = vpop.f32.mrb[0].mxu0
        %v593 = vpop.f32.mrb[0].mxu0
        %v594 = vpop.f32.mrb[0].mxu0
        %595 = vdwg.mxu0
        %v612 = vunpack.c.l.b16 %v353
        %v613 = vunpack.c.h.b16 %v353
        %v614 = vunpack.c.l.b16 %v354
        %v615 = vunpack.c.h.b16 %v354
        %v616 = vunpack.c.l.b16 %v355
        %v617 = vunpack.c.h.b16 %v355
        %v618 = vunpack.c.l.b16 %v356
        %v619 = vunpack.c.h.b16 %v356
        %v620 = vunpack.c.l.b16 %v357
        %v621 = vunpack.c.h.b16 %v357
        %v622 = vunpack.c.l.b16 %v358
        %v623 = vunpack.c.h.b16 %v358
        %v624 = vunpack.c.l.b16 %v359
        %v625 = vunpack.c.h.b16 %v359
        %v626 = vunpack.c.l.b16 %v360
        %v627 = vunpack.c.h.b16 %v360
        %v628 = vunpack.c.l.b16 %v361
        %v629 = vunpack.c.h.b16 %v361
        %v630 = vunpack.c.l.b16 %v362
        %v631 = vunpack.c.h.b16 %v362
        %v632 = vunpack.c.l.b16 %v363
        %v633 = vunpack.c.h.b16 %v363
        %v634 = vunpack.c.l.b16 %v364
        %v635 = vunpack.c.h.b16 %v364
        %v636 = vunpack.c.l.b16 %v365
        %v637 = vunpack.c.h.b16 %v365
        %v638 = vunpack.c.l.b16 %v366
        %v639 = vunpack.c.h.b16 %v366
        %v640 = vunpack.c.l.b16 %v367
        %v641 = vunpack.c.h.b16 %v367
        %v642 = vunpack.c.l.b16 %v368
        %v643 = vunpack.c.h.b16 %v368
        %v644 = vpack.c.b16 %v614, %v612
        %v645 = vpack.c.b16 %v615, %v613
        %v646 = vpack.c.b16 %v618, %v616
        %v647 = vpack.c.b16 %v619, %v617
        %v648 = vpack.c.b16 %v622, %v620
        %v649 = vpack.c.b16 %v623, %v621
        %v650 = vpack.c.b16 %v626, %v624
        %v651 = vpack.c.b16 %v627, %v625
        %v652 = vpack.c.b16 %v630, %v628
        %v653 = vpack.c.b16 %v631, %v629
        %v654 = vpack.c.b16 %v634, %v632
        %v655 = vpack.c.b16 %v635, %v633
        %v656 = vpack.c.b16 %v638, %v636
        %v657 = vpack.c.b16 %v639, %v637
        %v658 = vpack.c.b16 %v642, %v640
        %v659 = vpack.c.b16 %v643, %v641
        %676 = vmatprep.subr.bf16.mxu0 %v645
        %677 = vmatpush1.bf16.msra.mxu0 %v644
        %678 = vmatprep.subr.bf16.mxu0 %v647
        %679 = vmatpush1.bf16.msra.mxu0 %v646
        %680 = vmatprep.subr.bf16.mxu0 %v649
        %681 = vmatpush1.bf16.msra.mxu0 %v648
        %682 = vmatprep.subr.bf16.mxu0 %v651
        %683 = vmatpush1.bf16.msra.mxu0 %v650
        %684 = vmatprep.subr.bf16.mxu0 %v653
        %685 = vmatpush1.bf16.msra.mxu0 %v652
        %686 = vmatprep.subr.bf16.mxu0 %v655
        %687 = vmatpush1.bf16.msra.mxu0 %v654
        %688 = vmatprep.subr.bf16.mxu0 %v657
        %689 = vmatpush1.bf16.msra.mxu0 %v656
        %690 = vmatprep.subr.bf16.mxu0 %v659
        %691 = vmatpush1.bf16.msra.mxu0 %v658
        %692 = vmatprep.subr.bf16.mxu0 0
        %693 = vmatpush1.bf16.msra.mxu0 0
        %694 = vmatprep.subr.bf16.mxu0 0
        %695 = vmatpush1.bf16.msra.mxu0 0
        %696 = vmatprep.subr.bf16.mxu0 0
        %697 = vmatpush1.bf16.msra.mxu0 0
        %698 = vmatprep.subr.bf16.mxu0 0
        %699 = vmatpush1.bf16.msra.mxu0 0
        %700 = vmatprep.subr.bf16.mxu0 0
        %701 = vmatpush1.bf16.msra.mxu0 0
        %702 = vmatprep.subr.bf16.mxu0 0
        %703 = vmatpush1.bf16.msra.mxu0 0
        %704 = vmatprep.subr.bf16.mxu0 0
        %705 = vmatpush1.bf16.msra.mxu0 0
        %706 = vmatprep.subr.bf16.mxu0 0
        %707 = vmatpush1.bf16.msra.mxu0 0
        %708 = vmatprep.mubr.bf16.mxu0 0
        %709 = vmatmul.mubr.bf16.gmra.mrb[0].mxu0 %v386
        %v710 = vpop.f32.mrb[0].mxu0
        %v711 = vadd.f32 0.0, %v710
        %v712 = vpop.f32.mrb[0].mxu0
        %v713 = vadd.f32 0.0, %v712
        %v714 = vpop.f32.mrb[0].mxu0
        %v715 = vpop.f32.mrb[0].mxu0
        %716 = vdwg.mxu0
        %v717 = vadd.f32 %v550, %v711
        %v718 = vxor.u32 %v717, 2147483648
        %v719 = vmul.f32 %v718, 1.442695
        %v720 = vpow.pop %v719
        %v721 = vadd.f32 %v720, 1.0
        %v722 = vrcp.pop %v721
        %v723 = vmul.f32 1.0, %v722
        %v724 = vadd.f32 %v552, %v713
        %v725 = vxor.u32 %v724, 2147483648
        %v726 = vmul.f32 %v725, 1.442695
        %v727 = vpow.pop %v726
        %v728 = vadd.f32 %v727, 1.0
        %v729 = vrcp.pop %v728
        %v730 = vmul.f32 1.0, %v729
        %v731 = vunpack.c.l.bf16 %v386
        %v732 = vmul.f32 %v730, %v731
        %v733 = vpack.c.bf16 %v732, %v732
        %v750 = vunpack.c.l.b16 %v369
        %v751 = vunpack.c.l.b16 %v370
        %v752 = vunpack.c.l.b16 %v371
        %v753 = vunpack.c.l.b16 %v372
        %v754 = vunpack.c.l.b16 %v373
        %v755 = vunpack.c.l.b16 %v374
        %v756 = vunpack.c.l.b16 %v375
        %v757 = vunpack.c.l.b16 %v376
        %v758 = vunpack.c.l.b16 %v377
        %v759 = vunpack.c.l.b16 %v378
        %v760 = vunpack.c.l.b16 %v379
        %v761 = vunpack.c.l.b16 %v380
        %v762 = vunpack.c.l.b16 %v381
        %v763 = vunpack.c.l.b16 %v382
        %v764 = vunpack.c.l.b16 %v383
        %v765 = vunpack.c.l.b16 %v384
        %v766 = vpack.c.b16 %v751, %v750
        %v767 = vpack.c.b16 %v753, %v752
        %v768 = vpack.c.b16 %v755, %v754
        %v769 = vpack.c.b16 %v757, %v756
        %v770 = vpack.c.b16 %v759, %v758
        %v771 = vpack.c.b16 %v761, %v760
        %v772 = vpack.c.b16 %v763, %v762
        %v773 = vpack.c.b16 %v765, %v764
        %782 = vmatprep.subr.bf16.mxu0 0
        %783 = vmatpush1.bf16.msra.mxu0 %v766
        %784 = vmatprep.subr.bf16.mxu0 0
        %785 = vmatpush1.bf16.msra.mxu0 %v767
        %786 = vmatprep.subr.bf16.mxu0 0
        %787 = vmatpush1.bf16.msra.mxu0 %v768
        %788 = vmatprep.subr.bf16.mxu0 0
        %789 = vmatpush1.bf16.msra.mxu0 %v769
        %790 = vmatprep.subr.bf16.mxu0 0
        %791 = vmatpush1.bf16.msra.mxu0 %v770
        %792 = vmatprep.subr.bf16.mxu0 0
        %793 = vmatpush1.bf16.msra.mxu0 %v771
        %794 = vmatprep.subr.bf16.mxu0 0
        %795 = vmatpush1.bf16.msra.mxu0 %v772
        %796 = vmatprep.subr.bf16.mxu0 0
        %797 = vmatpush1.bf16.msra.mxu0 %v773
        %798 = vmatprep.subr.bf16.mxu0 0
        %799 = vmatpush1.bf16.msra.mxu0 0
        %800 = vmatprep.subr.bf16.mxu0 0
        %801 = vmatpush1.bf16.msra.mxu0 0
        %802 = vmatprep.subr.bf16.mxu0 0
        %803 = vmatpush1.bf16.msra.mxu0 0
        %804 = vmatprep.subr.bf16.mxu0 0
        %805 = vmatpush1.bf16.msra.mxu0 0
        %806 = vmatprep.subr.bf16.mxu0 0
        %807 = vmatpush1.bf16.msra.mxu0 0
        %808 = vmatprep.subr.bf16.mxu0 0
        %809 = vmatpush1.bf16.msra.mxu0 0
        %810 = vmatprep.subr.bf16.mxu0 0
        %811 = vmatpush1.bf16.msra.mxu0 0
        %812 = vmatprep.subr.bf16.mxu0 0
        %813 = vmatpush1.bf16.msra.mxu0 0
        %814 = vmatprep.mubr.bf16.mxu0 0
        %815 = vmatmul.mubr.bf16.gmra.mrb[0].mxu0 %v733
        %v816 = vpop.f32.mrb[0].mxu0
        %v817 = vadd.f32 0.0, %v816
        %v818 = vpop.f32.mrb[0].mxu0
        %v819 = vpop.f32.mrb[0].mxu0
        %v820 = vpop.f32.mrb[0].mxu0
        %821 = vdwg.mxu0
        %v822 = vadd.f32 %v591, %v817
        %v823 = vtanh.pop %v822
        %v824 = vsub.f32 %v823, %v731
        %v825 = vmul.f32 %v723, %v824
        %v826 = vadd.f32 %v731, %v825
        %827 = vst [vmem:[%s319] sm:$0xff] %v826
        %s828 = sand.u32 %s149, 1
        %s829 = scalar_lea.sflag [#allocation4], %s828
        %s830 = sand.u32 %s149, 1
        %s831 = smul.addr %s830, 8
        %s832 = scalar_lea.vmem [#allocation11], %s831
        // Predicated region
        $region61: #{tpu_custom_call.1} parent=39 // pred_check
          %p833 = pneg %p159
        $region62: #{tpu_custom_call.1} parent=39 // pred_check_branch
          %835 = sbr.rel (%p833) target = $region64
        $region63: #{tpu_custom_call.1} parent=39 // pred_region
          %s837 = ssub.s32 128, 128
          %838 = vsyncadd %s829, %s837
          %s839 = smul.addr %s26, 128
          %s840 = scalar_lea.hbm %s5, %s839
          %s842 = sshll.u32 %s832, 4
          %s843 = int_to_ptr.vmem [resolvable:$true] %s842
          %845 = dma.vmem_to_hbm [thread:$0]  %s843, 128, %s840, %s829
        $region64: #{tpu_custom_call.1} parent=39 // pred_fallthru
          _
      $region40: #{tpu_custom_call.1} parent=5 // pred_fallthru
        _
      %p846 = scmp.le.s32.totalorder 2, %s21
      // Predicated region
      $region65: #{tpu_custom_call.1} parent=5 // pred_check
        %p847 = pneg %p846
      $region66: #{tpu_custom_call.1} parent=5 // pred_check_branch
        %849 = sbr.rel (%p847) target = $region68
      $region67: #{tpu_custom_call.1} parent=5 // pred_region
        %s850 = ssub.s32 %s21, 2
        // Predicated region
        $region69: #{tpu_custom_call.1} parent=67 // pred_check
          %p851 = pneg %p165
        $region70: #{tpu_custom_call.1} parent=67 // pred_check_branch
          %853 = sbr.rel (%p851) target = $region72
        $region71: #{tpu_custom_call.1} parent=67 // pred_region
          %s854 = sand.u32 %s150, 1
          %s855 = scalar_lea.sflag [#allocation4], %s854
          %s856 = sand.u32 %s150, 1
          %s857 = smul.addr %s856, 8
          %s858 = scalar_lea.vmem [#allocation11], %s857
          %859 = dma.done %s855, 128
        $region72: #{tpu_custom_call.1} parent=67 // pred_fallthru
          _
      $region68: #{tpu_custom_call.1} parent=5 // pred_fallthru
        _
    $region6: #{tpu_custom_call.1} parent=1 // loop_footer
      %s25 = sadd.s32 1, %s21
    $region7: #{tpu_custom_call.1} parent=1 // loop_footer_branch
      %20 = sbr.rel target = $region3
    $region8: #{tpu_custom_call.1} parent=1 // loop_exit
      _
    %860 = vsyncpa [#allocation3], 1
    %s861 = scalar_lea.sflag [#allocation3], 1
    %862 = vsyncpa %s861, 1
    %863 = vsyncpa [#allocation6], 1
    %s864 = scalar_lea.sflag [#allocation6], 1
    %865 = vsyncpa %s864, 1
    %866 = vsyncpa [#allocation9], 1
    %867 = vsyncpa [#allocation4], 1
    %s868 = scalar_lea.sflag [#allocation4], 1
    %869 = vsyncpa %s868, 1

</llo_original>
